<compile_context>
chip_gen: v7x
topology: tpu7x:2x2x1
jax: 0.10.0
libtpu: 0.0.40
codegen_flags: <defaults>
</compile_context>

<pallas_src>
import jax
import jax.numpy as jnp
from jax.experimental import pallas as pl
from jax.experimental.pallas import tpu as pltpu


def _round_up(x, m):
    return (x + m - 1) // m * m


def _gru_layer_kernel(x_ref, wih_ref, whh_ref, bias_ref, bhn_ref,
                      out_ref, hT_ref, xg_scr):
    # x_ref:    (T, Bt, Dl)   time-major inputs for this batch tile
    # wih_ref:  (Dl, 3Hp)     fused input-projection weight, gate blocks r|z|n
    # whh_ref:  (Hp, 3Hp)     fused hidden-projection weight, gate blocks r|z|n
    # bias_ref: (1, 3Hp)      b_ih (+ b_hr, b_hz folded into the r/z blocks)
    # bhn_ref:  (1, Hp)       b_hn (must stay inside r * (.) per GRU formula)
    # out_ref:  (T, Bt, Hp)   per-timestep hidden states (lane-dense)
    # hT_ref:   (Bt, Hp)      final hidden state
    # xg_scr:   (T, Bt, 3Hp)  VMEM stash of the precomputed input projections
    T, Bt, Dl = x_ref.shape
    Hp3 = whh_ref.shape[1]
    Hp = Hp3 // 3

    # ---- Fused input projection for every timestep: one big MXU matmul,
    # biases (b_i* and b_hr/b_hz) folded in once, stashed (bf16 by default).
    x_all = x_ref[...].reshape(T * Bt, Dl)
    xg = jnp.dot(x_all, wih_ref[...], preferred_element_type=jnp.float32)
    xg = xg + bias_ref[...]
    xg_scr[...] = xg.reshape(T, Bt, Hp3).astype(xg_scr.dtype)

    # ---- Sequential recurrence, unrolled for LLO scheduling visibility.
    # The b_hn broadcast is hoisted once (JAX does not CSE broadcast_in_dim).
    # W_hh stays resident in VMEM and is read per step as the MXU RHS: pulling
    # the full (Hp, 3Hp) tile into vregs before the loop would exceed the
    # 64-vreg budget and force spills.
    # TODO(synk): pin W_hh in MXU staging regs via pltpu.matmul_push_rhs /
    # matmul_acc_lhs / matmul_pop to avoid re-pushing the RHS every timestep.
    bhn = jnp.broadcast_to(bhn_ref[...], (Bt, Hp))

    def step(t, h_prev):
        xg_t = xg_scr[t].astype(jnp.float32)                        # (Bt, 3Hp)
        hg = jnp.dot(h_prev, whh_ref[...],
                     preferred_element_type=jnp.float32)            # (Bt, 3Hp)
        r = jax.nn.sigmoid(xg_t[:, :Hp] + hg[:, :Hp])
        z = jax.nn.sigmoid(xg_t[:, Hp:2 * Hp] + hg[:, Hp:2 * Hp])
        n = jnp.tanh(xg_t[:, 2 * Hp:] + r * (hg[:, 2 * Hp:] + bhn))
        h_new = (1.0 - z) * n + z * h_prev
        out_ref[t] = h_new.astype(out_ref.dtype)
        return h_new

    h0 = jnp.zeros((Bt, Hp), jnp.float32)
    h_T = jax.lax.fori_loop(0, T, step, h0,
                            unroll=True if T <= 32 else 4)
    hT_ref[...] = h_T.astype(hT_ref.dtype)


def _default_block_b(B):
    """bt = B on single-TC chips; bt = B/2 on v7x so the 'parallel' batch-tile
    axis shards across the two TensorCores (only when B/2 stays 8-aligned)."""
    try:
        kind = jax.devices()[0].device_kind.lower()
    except Exception:
        kind = ""
    if "v7" in kind and B % 16 == 0:
        return B // 2
    return B


def _vmem_limit_bytes(T, bt, Dl, Hp, x_isz, out_isz, xg_isz):
    x_blk = T * bt * Dl * x_isz
    out_blk = T * bt * Hp * out_isz
    ht_blk = bt * Hp * 4
    xg_scr = T * bt * 3 * Hp * xg_isz
    weights = Dl * 3 * Hp * x_isz + Hp * 3 * Hp * 4 + 4 * Hp * 4
    est = 2 * (x_blk + out_blk + ht_blk + weights) + xg_scr   # double buffers
    return int(min(100 * 2**20, max(32 * 2**20, 2 * est)))


def _pack_gru_params(w_ih, w_hh, b_ih, b_hh, d_in_pad, H, Hp, w_in_dtype):
    """Pack PyTorch-layout GRU params (gate order r|z|n) into lane-aligned
    fused blocks of Hp columns per gate; fold b_ih + b_hr + b_hz once."""
    d_in = w_ih.shape[1]
    wih_t = jnp.zeros((d_in_pad, 3 * Hp), jnp.float32)
    whh_t = jnp.zeros((Hp, 3 * Hp), jnp.float32)
    bias_fold = jnp.zeros((1, 3 * Hp), jnp.float32)
    for g in range(3):                                      # r, z, n
        wih_t = wih_t.at[:d_in, g * Hp:g * Hp + H].set(
            w_ih[g * H:(g + 1) * H, :].T.astype(jnp.float32))
        whh_t = whh_t.at[:H, g * Hp:g * Hp + H].set(
            w_hh[g * H:(g + 1) * H, :].T.astype(jnp.float32))
        bg = b_ih[g * H:(g + 1) * H].astype(jnp.float32)
        if g < 2:                                           # fold b_hr, b_hz
            bg = bg + b_hh[g * H:(g + 1) * H].astype(jnp.float32)
        bias_fold = bias_fold.at[0, g * Hp:g * Hp + H].set(bg)
    bhn = jnp.zeros((1, Hp), jnp.float32).at[0, :H].set(
        b_hh[2 * H:3 * H].astype(jnp.float32))
    return wih_t.astype(w_in_dtype), whh_t, bias_fold, bhn


def _gru_single_layer_tm(x_tm, wih_t, whh_t, bias_fold, bhn, *,
                         Hp, block_b, out_dtype, xg_dtype):
    """One GRU layer on time-major input x_tm: (T, B, Dl) -> ((T, B, Hp), (B, Hp))."""
    T, B, Dl = x_tm.shape
    bt = _default_block_b(B) if block_b is None else min(block_b, B)
    assert bt == B or (bt % 8 == 0 and B % bt == 0), (
        "batch tile must equal B or be an 8-aligned divisor of B")

    vmem_limit = _vmem_limit_bytes(
        T, bt, Dl, Hp, x_tm.dtype.itemsize,
        jnp.dtype(out_dtype).itemsize, jnp.dtype(xg_dtype).itemsize)

    # NOTE: when the grid collapses to 1, pipeline_mode=pl.Buffered(1) on the
    # x/out specs would drop the wasted second buffer; omitted here since VMEM
    # is far from the limit at these sizes.
    out_tm, h_T = pl.pallas_call(
        _gru_layer_kernel,
        out_shape=(jax.ShapeDtypeStruct((T, B, Hp), out_dtype),
                   jax.ShapeDtypeStruct((B, Hp), jnp.float32)),
        grid_spec=pltpu.PrefetchScalarGridSpec(
            num_scalar_prefetch=0,
            grid=(B // bt,),
            in_specs=[
                pl.BlockSpec((T, bt, Dl), lambda b: (0, b, 0)),   # x (time-major)
                pl.BlockSpec((Dl, 3 * Hp), lambda b: (0, 0)),     # W_ih^T packed
                pl.BlockSpec((Hp, 3 * Hp), lambda b: (0, 0)),     # W_hh^T packed
                pl.BlockSpec((1, 3 * Hp), lambda b: (0, 0)),      # folded bias
                pl.BlockSpec((1, Hp), lambda b: (0, 0)),          # b_hn
            ],
            out_specs=(pl.BlockSpec((T, bt, Hp), lambda b: (0, b, 0)),
                       pl.BlockSpec((bt, Hp), lambda b: (b, 0))),
            scratch_shapes=[pltpu.VMEM((T, bt, 3 * Hp), xg_dtype)],
        ),
        compiler_params=pltpu.CompilerParams(
            dimension_semantics=("parallel",),
            vmem_limit_bytes=vmem_limit),
    )(x_tm, wih_t, whh_t, bias_fold, bhn)
    return out_tm, h_T


def gru_layer_forward(x, layer_params, *, block_b=None, use_bf16=True):
    """Pallas equivalent of GRULayer.forward (eval mode).

    x: (B, T, in_dim) float32 (batch_first, like the PyTorch module).
    layer_params: list of (w_ih, w_hh, b_ih, b_hh) per GRU layer
                  (PyTorch layout: w_ih (3H, D_l), w_hh (3H, H), gate order r|z|n).
    Returns (out[-1, :, :], h[-1, :, :]) with PyTorch's indexing semantics:
    out[-1] is the last batch element's (T, H) sequence (batch_first out),
    h[-1] is the last layer's final hidden state (B, H).
    """
    B, T, D = x.shape
    n_layers = len(layer_params)
    H = layer_params[0][1].shape[1]
    Hp = _round_up(H, 128)

    act_dtype = jnp.bfloat16 if use_bf16 else jnp.float32
    # Single transpose at the entry; layers exchange time-major activations.
    layer_in = jnp.transpose(x, (1, 0, 2)).astype(act_dtype)      # (T, B, D)

    h_T_last = None
    for li, (w_ih, w_hh, b_ih, b_hh) in enumerate(layer_params):
        last = li == n_layers - 1
        d_in_pad = layer_in.shape[-1]
        wih_t, whh_t, bias_fold, bhn = _pack_gru_params(
            w_ih, w_hh, b_ih, b_hh, d_in_pad, H, Hp, w_in_dtype=act_dtype)
        out_dtype = jnp.float32 if last else act_dtype
        out_tm, h_T = _gru_single_layer_tm(
            layer_in, wih_t, whh_t, bias_fold, bhn,
            Hp=Hp, block_b=block_b, out_dtype=out_dtype, xg_dtype=act_dtype)
        layer_in = out_tm                      # (T, B, Hp) feeds next layer
        h_T_last = h_T
        # TODO(synk): inter-layer dropout is train-mode only; identity in eval.

    out = layer_in[:, -1, :H]                  # == out[-1, :, :]  -> (T, H)
    h = h_T_last[:, :H].astype(jnp.float32)    # == h[-1, :, :]    -> (B, H)
    return out, h


def _reference_gru(x, layer_params):
    """Pure-JAX f32 reference mirroring nn.GRU (batch_first=True, eval mode)."""
    B = x.shape[0]
    layer_in = x
    h_finals = []
    for (w_ih, w_hh, b_ih, b_hh) in layer_params:
        H = w_hh.shape[1]

        def step(h, x_t, w_ih=w_ih, w_hh=w_hh, b_ih=b_ih, b_hh=b_hh, H=H):
            gi = x_t @ w_ih.T + b_ih
            gh = h @ w_hh.T + b_hh
            ir, iz, inn = gi[:, :H], gi[:, H:2 * H], gi[:, 2 * H:]
            hr, hz, hn = gh[:, :H], gh[:, H:2 * H], gh[:, 2 * H:]
            r = jax.nn.sigmoid(ir + hr)
            z = jax.nn.sigmoid(iz + hz)
            n = jnp.tanh(inn + r * hn)
            h_new = (1.0 - z) * n + z * h
            return h_new, h_new

        h0 = jnp.zeros((B, H), jnp.float32)
        hT, outs = jax.lax.scan(step, h0, jnp.transpose(layer_in, (1, 0, 2)))
        layer_in = jnp.transpose(outs, (1, 0, 2))
        h_finals.append(hT)
    out = layer_in
    h = jnp.stack(h_finals, axis=0)
    return out[-1, :, :], h[-1, :, :]


if __name__ == "__main__":
    batch, seq_len, in_dim, hid_dim, n_layers = 2, 8, 16, 32, 2
    dropout = 0.3    # identity in eval mode (module also zeroes it if n_layers == 1)

    key = jax.random.PRNGKey(0)
    params = []
    bound = 1.0 / (hid_dim ** 0.5)
    d_in = in_dim
    for _ in range(n_layers):
        key, k1, k2, k3, k4 = jax.random.split(key, 5)
        w_ih = jax.random.uniform(k1, (3 * hid_dim, d_in), jnp.float32, -bound, bound)
        w_hh = jax.random.uniform(k2, (3 * hid_dim, hid_dim), jnp.float32, -bound, bound)
        b_ih = jax.random.uniform(k3, (3 * hid_dim,), jnp.float32, -bound, bound)
        b_hh = jax.random.uniform(k4, (3 * hid_dim,), jnp.float32, -bound, bound)
        params.append((w_ih, w_hh, b_ih, b_hh))
        d_in = hid_dim

    key, kx = jax.random.split(key)
    x = jax.random.normal(kx, (batch, seq_len, in_dim), jnp.float32)

    ref_out, ref_h = _reference_gru(x, params)

    # Full-f32 path: tight tolerance vs the recurrent reference.
    out32, h32 = jax.block_until_ready(gru_layer_forward(x, params, use_bf16=False))
    assert out32.shape == (seq_len, hid_dim), out32.shape
    assert h32.shape == (batch, hid_dim), h32.shape
    assert jnp.allclose(out32, ref_out, atol=1e-4, rtol=1e-4), "f32 out mismatch"
    assert jnp.allclose(h32, ref_h, atol=1e-4, rtol=1e-4), "f32 h mismatch"

    # Default path: bf16 input-projection operands + bf16 xg stash
    # (f32 accumulation, f32 recurrence) — looser tolerance.
    out16, h16 = jax.block_until_ready(gru_layer_forward(x, params))
    assert out16.shape == (seq_len, hid_dim), out16.shape
    assert h16.shape == (batch, hid_dim), h16.shape
    assert jnp.allclose(out16, ref_out, atol=2e-2, rtol=2e-2), "bf16 out mismatch"
    assert jnp.allclose(h16, ref_h, atol=2e-2, rtol=2e-2), "bf16 h mismatch"

    print("KERNEL_OK")
</pallas_src>

<mosaic_0001>
module attributes {stable_mosaic.version = 11 : i64} {
  func.func @_gru_layer_kernel(%arg0: i32, %arg1: memref<8x2x16xf32, #tpu.memory_space<vmem>>, %arg2: memref<16x384xf32, #tpu.memory_space<vmem>>, %arg3: memref<128x384xf32, #tpu.memory_space<vmem>>, %arg4: memref<1x384xf32, #tpu.memory_space<vmem>>, %arg5: memref<1x128xf32, #tpu.memory_space<vmem>>, %arg6: memref<8x2x128xf32, #tpu.memory_space<vmem>>, %arg7: memref<2x128xf32, #tpu.memory_space<vmem>>, %arg8: memref<8x2x384xf32, #tpu.memory_space<vmem>>) attributes {dimension_semantics = [#tpu.dimension_semantics<parallel>], iteration_bounds = array<i64: 1>, scalar_prefetch = 0 : i64, scratch_operands = 1 : i64, tpu.core_type = #tpu.core_type<tc>, window_params = [{transform_indices = @transform_0, window_bounds = array<i64: 8, 2, 16>}, {pipeline_mode = #tpu.pipeline_mode<synchronous>, transform_indices = @transform_1, window_bounds = array<i64: 16, 384>}, {pipeline_mode = #tpu.pipeline_mode<synchronous>, transform_indices = @transform_2, window_bounds = array<i64: 128, 384>}, {pipeline_mode = #tpu.pipeline_mode<synchronous>, transform_indices = @transform_3, window_bounds = array<i64: 1, 384>}, {pipeline_mode = #tpu.pipeline_mode<synchronous>, transform_indices = @transform_4, window_bounds = array<i64: 1, 128>}, {transform_indices = @transform_5, window_bounds = array<i64: 8, 2, 128>}, {transform_indices = @transform_6, window_bounds = array<i64: 2, 128>}]} {
    %c0 = arith.constant 0 : index
    %c0_0 = arith.constant 0 : index
    %c0_1 = arith.constant 0 : index
    %0 = vector.load %arg1[%c0, %c0_0, %c0_1] : memref<8x2x16xf32, #tpu.memory_space<vmem>>, vector<8x2x16xf32>
    %1 = vector.shape_cast %0 : vector<8x2x16xf32> to vector<16x16xf32>
    %c0_2 = arith.constant 0 : index
    %c0_3 = arith.constant 0 : index
    %2 = vector.load %arg2[%c0_2, %c0_3] : memref<16x384xf32, #tpu.memory_space<vmem>>, vector<16x384xf32>
    %cst = arith.constant dense<0.000000e+00> : vector<16x384xf32>
    %3 = tpu.matmul %1, %2, %cst {dimension_numbers = #tpu.dot_dimension_numbers<[1], [0], [0], [1], [0, 0, 1, 1], [], []>} : vector<16x16xf32>, vector<16x384xf32>, vector<16x384xf32> -> vector<16x384xf32>
    %c0_4 = arith.constant 0 : index
    %c0_5 = arith.constant 0 : index
    %4 = vector.load %arg4[%c0_4, %c0_5] : memref<1x384xf32, #tpu.memory_space<vmem>>, vector<1x384xf32>
    %5 = vector.broadcast %4 : vector<1x384xf32> to vector<16x384xf32>
    %6 = arith.addf %3, %5 : vector<16x384xf32>
    %7 = vector.shape_cast %6 : vector<16x384xf32> to vector<8x2x384xf32>
    %c0_6 = arith.constant 0 : index
    %c0_7 = arith.constant 0 : index
    %c0_8 = arith.constant 0 : index
    %8 = vector.load %arg8[%c0_6, %c0_7, %c0_8] : memref<8x2x384xf32, #tpu.memory_space<vmem>>, vector<8x2x384xf32>
    tpu.vector_store %arg8[%c0_6, %c0_7, %c0_8], %7 {strides = array<i32>} : memref<8x2x384xf32, #tpu.memory_space<vmem>>, vector<8x2x384xf32>,
    %c0_9 = arith.constant 0 : index
    %c0_10 = arith.constant 0 : index
    %9 = vector.load %arg5[%c0_9, %c0_10] : memref<1x128xf32, #tpu.memory_space<vmem>>, vector<1x128xf32>
    %10 = vector.shape_cast %9 : vector<1x128xf32> to vector<1x128xf32>
    %11 = vector.broadcast %10 : vector<1x128xf32> to vector<2x128xf32>
    %cst_11 = arith.constant 0.000000e+00 : f32
    %12 = vector.broadcast %cst_11 : f32 to vector<2x128xf32>
    %c0_i32 = arith.constant 0 : i32
    %13 = arith.index_cast %c0_i32 : i32 to index
    %c0_12 = arith.constant 0 : index
    %c0_13 = arith.constant 0 : index
    %14 = vector.load %arg8[%13, %c0_12, %c0_13] : memref<8x2x384xf32, #tpu.memory_space<vmem>>, vector<1x2x384xf32>
    %15 = vector.shape_cast %14 : vector<1x2x384xf32> to vector<2x384xf32>
    %c0_14 = arith.constant 0 : index
    %c0_15 = arith.constant 0 : index
    %16 = vector.load %arg3[%c0_14, %c0_15] : memref<128x384xf32, #tpu.memory_space<vmem>>, vector<128x384xf32>
    %cst_16 = arith.constant dense<0.000000e+00> : vector<2x384xf32>
    %17 = tpu.matmul %12, %16, %cst_16 {dimension_numbers = #tpu.dot_dimension_numbers<[1], [0], [0], [1], [0, 0, 1, 1], [], []>} : vector<2x128xf32>, vector<128x384xf32>, vector<2x384xf32> -> vector<2x384xf32>
    %18 = vector.extract_strided_slice %15 {offsets = [0, 0], sizes = [2, 128], strides = [1, 1]} : vector<2x384xf32> to vector<2x128xf32>
    %19 = vector.extract_strided_slice %17 {offsets = [0, 0], sizes = [2, 128], strides = [1, 1]} : vector<2x384xf32> to vector<2x128xf32>
    %20 = arith.addf %18, %19 : vector<2x128xf32>
    %21 = arith.negf %20 : vector<2x128xf32>
    %22 = math.exp %21 : vector<2x128xf32>
    %cst_17 = arith.constant 1.000000e+00 : f32
    %23 = vector.broadcast %cst_17 : f32 to vector<2x128xf32>
    %24 = arith.addf %23, %22 : vector<2x128xf32>
    %25 = arith.divf %23, %24 : vector<2x128xf32>
    %26 = vector.extract_strided_slice %15 {offsets = [0, 128], sizes = [2, 128], strides = [1, 1]} : vector<2x384xf32> to vector<2x128xf32>
    %27 = vector.extract_strided_slice %17 {offsets = [0, 128], sizes = [2, 128], strides = [1, 1]} : vector<2x384xf32> to vector<2x128xf32>
    %28 = arith.addf %26, %27 : vector<2x128xf32>
    %29 = arith.negf %28 : vector<2x128xf32>
    %30 = math.exp %29 : vector<2x128xf32>
    %cst_18 = arith.constant 1.000000e+00 : f32
    %31 = vector.broadcast %cst_18 : f32 to vector<2x128xf32>
    %32 = arith.addf %31, %30 : vector<2x128xf32>
    %33 = arith.divf %31, %32 : vector<2x128xf32>
    %34 = vector.extract_strided_slice %15 {offsets = [0, 256], sizes = [2, 128], strides = [1, 1]} : vector<2x384xf32> to vector<2x128xf32>
    %35 = vector.extract_strided_slice %17 {offsets = [0, 256], sizes = [2, 128], strides = [1, 1]} : vector<2x384xf32> to vector<2x128xf32>
    %36 = arith.addf %35, %11 : vector<2x128xf32>
    %37 = arith.mulf %25, %36 : vector<2x128xf32>
    %38 = arith.addf %34, %37 : vector<2x128xf32>
    %39 = math.tanh %38 : vector<2x128xf32>
    %cst_19 = arith.constant 1.000000e+00 : f32
    %40 = vector.broadcast %cst_19 : f32 to vector<2x128xf32>
    %41 = arith.subf %40, %33 : vector<2x128xf32>
    %42 = arith.mulf %41, %39 : vector<2x128xf32>
    %43 = arith.mulf %33, %12 : vector<2x128xf32>
    %44 = arith.addf %42, %43 : vector<2x128xf32>
    %45 = arith.index_cast %c0_i32 : i32 to index
    %c0_20 = arith.constant 0 : index
    %c0_21 = arith.constant 0 : index
    %46 = vector.load %arg6[%45, %c0_20, %c0_21] : memref<8x2x128xf32, #tpu.memory_space<vmem>>, vector<1x2x128xf32>
    %47 = vector.shape_cast %46 : vector<1x2x128xf32> to vector<2x128xf32>
    %48 = vector.shape_cast %44 : vector<2x128xf32> to vector<1x2x128xf32>
    tpu.vector_store %arg6[%45, %c0_20, %c0_21], %48 {strides = array<i32>} : memref<8x2x128xf32, #tpu.memory_space<vmem>>, vector<1x2x128xf32>,
    %c1_i32 = arith.constant 1 : i32
    %49 = arith.index_cast %c1_i32 : i32 to index
    %c0_22 = arith.constant 0 : index
    %c0_23 = arith.constant 0 : index
    %50 = vector.load %arg8[%49, %c0_22, %c0_23] : memref<8x2x384xf32, #tpu.memory_space<vmem>>, vector<1x2x384xf32>
    %51 = vector.shape_cast %50 : vector<1x2x384xf32> to vector<2x384xf32>
    %c0_24 = arith.constant 0 : index
    %c0_25 = arith.constant 0 : index
    %52 = vector.load %arg3[%c0_24, %c0_25] : memref<128x384xf32, #tpu.memory_space<vmem>>, vector<128x384xf32>
    %cst_26 = arith.constant dense<0.000000e+00> : vector<2x384xf32>
    %53 = tpu.matmul %44, %52, %cst_26 {dimension_numbers = #tpu.dot_dimension_numbers<[1], [0], [0], [1], [0, 0, 1, 1], [], []>} : vector<2x128xf32>, vector<128x384xf32>, vector<2x384xf32> -> vector<2x384xf32>
    %54 = vector.extract_strided_slice %51 {offsets = [0, 0], sizes = [2, 128], strides = [1, 1]} : vector<2x384xf32> to vector<2x128xf32>
    %55 = vector.extract_strided_slice %53 {offsets = [0, 0], sizes = [2, 128], strides = [1, 1]} : vector<2x384xf32> to vector<2x128xf32>
    %56 = arith.addf %54, %55 : vector<2x128xf32>
    %57 = arith.negf %56 : vector<2x128xf32>
    %58 = math.exp %57 : vector<2x128xf32>
    %cst_27 = arith.constant 1.000000e+00 : f32
    %59 = vector.broadcast %cst_27 : f32 to vector<2x128xf32>
    %60 = arith.addf %59, %58 : vector<2x128xf32>
    %61 = arith.divf %59, %60 : vector<2x128xf32>
    %62 = vector.extract_strided_slice %51 {offsets = [0, 128], sizes = [2, 128], strides = [1, 1]} : vector<2x384xf32> to vector<2x128xf32>
    %63 = vector.extract_strided_slice %53 {offsets = [0, 128], sizes = [2, 128], strides = [1, 1]} : vector<2x384xf32> to vector<2x128xf32>
    %64 = arith.addf %62, %63 : vector<2x128xf32>
    %65 = arith.negf %64 : vector<2x128xf32>
    %66 = math.exp %65 : vector<2x128xf32>
    %cst_28 = arith.constant 1.000000e+00 : f32
    %67 = vector.broadcast %cst_28 : f32 to vector<2x128xf32>
    %68 = arith.addf %67, %66 : vector<2x128xf32>
    %69 = arith.divf %67, %68 : vector<2x128xf32>
    %70 = vector.extract_strided_slice %51 {offsets = [0, 256], sizes = [2, 128], strides = [1, 1]} : vector<2x384xf32> to vector<2x128xf32>
    %71 = vector.extract_strided_slice %53 {offsets = [0, 256], sizes = [2, 128], strides = [1, 1]} : vector<2x384xf32> to vector<2x128xf32>
    %72 = arith.addf %71, %11 : vector<2x128xf32>
    %73 = arith.mulf %61, %72 : vector<2x128xf32>
    %74 = arith.addf %70, %73 : vector<2x128xf32>
    %75 = math.tanh %74 : vector<2x128xf32>
    %cst_29 = arith.constant 1.000000e+00 : f32
    %76 = vector.broadcast %cst_29 : f32 to vector<2x128xf32>
    %77 = arith.subf %76, %69 : vector<2x128xf32>
    %78 = arith.mulf %77, %75 : vector<2x128xf32>
    %79 = arith.mulf %69, %44 : vector<2x128xf32>
    %80 = arith.addf %78, %79 : vector<2x128xf32>
    %81 = arith.index_cast %c1_i32 : i32 to index
    %c0_30 = arith.constant 0 : index
    %c0_31 = arith.constant 0 : index
    %82 = vector.load %arg6[%81, %c0_30, %c0_31] : memref<8x2x128xf32, #tpu.memory_space<vmem>>, vector<1x2x128xf32>
    %83 = vector.shape_cast %82 : vector<1x2x128xf32> to vector<2x128xf32>
    %84 = vector.shape_cast %80 : vector<2x128xf32> to vector<1x2x128xf32>
    tpu.vector_store %arg6[%81, %c0_30, %c0_31], %84 {strides = array<i32>} : memref<8x2x128xf32, #tpu.memory_space<vmem>>, vector<1x2x128xf32>,
    %c2_i32 = arith.constant 2 : i32
    %85 = arith.index_cast %c2_i32 : i32 to index
    %c0_32 = arith.constant 0 : index
    %c0_33 = arith.constant 0 : index
    %86 = vector.load %arg8[%85, %c0_32, %c0_33] : memref<8x2x384xf32, #tpu.memory_space<vmem>>, vector<1x2x384xf32>
    %87 = vector.shape_cast %86 : vector<1x2x384xf32> to vector<2x384xf32>
    %c0_34 = arith.constant 0 : index
    %c0_35 = arith.constant 0 : index
    %88 = vector.load %arg3[%c0_34, %c0_35] : memref<128x384xf32, #tpu.memory_space<vmem>>, vector<128x384xf32>
    %cst_36 = arith.constant dense<0.000000e+00> : vector<2x384xf32>
    %89 = tpu.matmul %80, %88, %cst_36 {dimension_numbers = #tpu.dot_dimension_numbers<[1], [0], [0], [1], [0, 0, 1, 1], [], []>} : vector<2x128xf32>, vector<128x384xf32>, vector<2x384xf32> -> vector<2x384xf32>
    %90 = vector.extract_strided_slice %87 {offsets = [0, 0], sizes = [2, 128], strides = [1, 1]} : vector<2x384xf32> to vector<2x128xf32>
    %91 = vector.extract_strided_slice %89 {offsets = [0, 0], sizes = [2, 128], strides = [1, 1]} : vector<2x384xf32> to vector<2x128xf32>
    %92 = arith.addf %90, %91 : vector<2x128xf32>
    %93 = arith.negf %92 : vector<2x128xf32>
    %94 = math.exp %93 : vector<2x128xf32>
    %cst_37 = arith.constant 1.000000e+00 : f32
    %95 = vector.broadcast %cst_37 : f32 to vector<2x128xf32>
    %96 = arith.addf %95, %94 : vector<2x128xf32>
    %97 = arith.divf %95, %96 : vector<2x128xf32>
    %98 = vector.extract_strided_slice %87 {offsets = [0, 128], sizes = [2, 128], strides = [1, 1]} : vector<2x384xf32> to vector<2x128xf32>
    %99 = vector.extract_strided_slice %89 {offsets = [0, 128], sizes = [2, 128], strides = [1, 1]} : vector<2x384xf32> to vector<2x128xf32>
    %100 = arith.addf %98, %99 : vector<2x128xf32>
    %101 = arith.negf %100 : vector<2x128xf32>
    %102 = math.exp %101 : vector<2x128xf32>
    %cst_38 = arith.constant 1.000000e+00 : f32
    %103 = vector.broadcast %cst_38 : f32 to vector<2x128xf32>
    %104 = arith.addf %103, %102 : vector<2x128xf32>
    %105 = arith.divf %103, %104 : vector<2x128xf32>
    %106 = vector.extract_strided_slice %87 {offsets = [0, 256], sizes = [2, 128], strides = [1, 1]} : vector<2x384xf32> to vector<2x128xf32>
    %107 = vector.extract_strided_slice %89 {offsets = [0, 256], sizes = [2, 128], strides = [1, 1]} : vector<2x384xf32> to vector<2x128xf32>
    %108 = arith.addf %107, %11 : vector<2x128xf32>
    %109 = arith.mulf %97, %108 : vector<2x128xf32>
    %110 = arith.addf %106, %109 : vector<2x128xf32>
    %111 = math.tanh %110 : vector<2x128xf32>
    %cst_39 = arith.constant 1.000000e+00 : f32
    %112 = vector.broadcast %cst_39 : f32 to vector<2x128xf32>
    %113 = arith.subf %112, %105 : vector<2x128xf32>
    %114 = arith.mulf %113, %111 : vector<2x128xf32>
    %115 = arith.mulf %105, %80 : vector<2x128xf32>
    %116 = arith.addf %114, %115 : vector<2x128xf32>
    %117 = arith.index_cast %c2_i32 : i32 to index
    %c0_40 = arith.constant 0 : index
    %c0_41 = arith.constant 0 : index
    %118 = vector.load %arg6[%117, %c0_40, %c0_41] : memref<8x2x128xf32, #tpu.memory_space<vmem>>, vector<1x2x128xf32>
    %119 = vector.shape_cast %118 : vector<1x2x128xf32> to vector<2x128xf32>
    %120 = vector.shape_cast %116 : vector<2x128xf32> to vector<1x2x128xf32>
    tpu.vector_store %arg6[%117, %c0_40, %c0_41], %120 {strides = array<i32>} : memref<8x2x128xf32, #tpu.memory_space<vmem>>, vector<1x2x128xf32>,
    %c3_i32 = arith.constant 3 : i32
    %121 = arith.index_cast %c3_i32 : i32 to index
    %c0_42 = arith.constant 0 : index
    %c0_43 = arith.constant 0 : index
    %122 = vector.load %arg8[%121, %c0_42, %c0_43] : memref<8x2x384xf32, #tpu.memory_space<vmem>>, vector<1x2x384xf32>
    %123 = vector.shape_cast %122 : vector<1x2x384xf32> to vector<2x384xf32>
    %c0_44 = arith.constant 0 : index
    %c0_45 = arith.constant 0 : index
    %124 = vector.load %arg3[%c0_44, %c0_45] : memref<128x384xf32, #tpu.memory_space<vmem>>, vector<128x384xf32>
    %cst_46 = arith.constant dense<0.000000e+00> : vector<2x384xf32>
    %125 = tpu.matmul %116, %124, %cst_46 {dimension_numbers = #tpu.dot_dimension_numbers<[1], [0], [0], [1], [0, 0, 1, 1], [], []>} : vector<2x128xf32>, vector<128x384xf32>, vector<2x384xf32> -> vector<2x384xf32>
    %126 = vector.extract_strided_slice %123 {offsets = [0, 0], sizes = [2, 128], strides = [1, 1]} : vector<2x384xf32> to vector<2x128xf32>
    %127 = vector.extract_strided_slice %125 {offsets = [0, 0], sizes = [2, 128], strides = [1, 1]} : vector<2x384xf32> to vector<2x128xf32>
    %128 = arith.addf %126, %127 : vector<2x128xf32>
    %129 = arith.negf %128 : vector<2x128xf32>
    %130 = math.exp %129 : vector<2x128xf32>
    %cst_47 = arith.constant 1.000000e+00 : f32
    %131 = vector.broadcast %cst_47 : f32 to vector<2x128xf32>
    %132 = arith.addf %131, %130 : vector<2x128xf32>
    %133 = arith.divf %131, %132 : vector<2x128xf32>
    %134 = vector.extract_strided_slice %123 {offsets = [0, 128], sizes = [2, 128], strides = [1, 1]} : vector<2x384xf32> to vector<2x128xf32>
    %135 = vector.extract_strided_slice %125 {offsets = [0, 128], sizes = [2, 128], strides = [1, 1]} : vector<2x384xf32> to vector<2x128xf32>
    %136 = arith.addf %134, %135 : vector<2x128xf32>
    %137 = arith.negf %136 : vector<2x128xf32>
    %138 = math.exp %137 : vector<2x128xf32>
    %cst_48 = arith.constant 1.000000e+00 : f32
    %139 = vector.broadcast %cst_48 : f32 to vector<2x128xf32>
    %140 = arith.addf %139, %138 : vector<2x128xf32>
    %141 = arith.divf %139, %140 : vector<2x128xf32>
    %142 = vector.extract_strided_slice %123 {offsets = [0, 256], sizes = [2, 128], strides = [1, 1]} : vector<2x384xf32> to vector<2x128xf32>
    %143 = vector.extract_strided_slice %125 {offsets = [0, 256], sizes = [2, 128], strides = [1, 1]} : vector<2x384xf32> to vector<2x128xf32>
    %144 = arith.addf %143, %11 : vector<2x128xf32>
    %145 = arith.mulf %133, %144 : vector<2x128xf32>
    %146 = arith.addf %142, %145 : vector<2x128xf32>
    %147 = math.tanh %146 : vector<2x128xf32>
    %cst_49 = arith.constant 1.000000e+00 : f32
    %148 = vector.broadcast %cst_49 : f32 to vector<2x128xf32>
    %149 = arith.subf %148, %141 : vector<2x128xf32>
    %150 = arith.mulf %149, %147 : vector<2x128xf32>
    %151 = arith.mulf %141, %116 : vector<2x128xf32>
    %152 = arith.addf %150, %151 : vector<2x128xf32>
    %153 = arith.index_cast %c3_i32 : i32 to index
    %c0_50 = arith.constant 0 : index
    %c0_51 = arith.constant 0 : index
    %154 = vector.load %arg6[%153, %c0_50, %c0_51] : memref<8x2x128xf32, #tpu.memory_space<vmem>>, vector<1x2x128xf32>
    %155 = vector.shape_cast %154 : vector<1x2x128xf32> to vector<2x128xf32>
    %156 = vector.shape_cast %152 : vector<2x128xf32> to vector<1x2x128xf32>
    tpu.vector_store %arg6[%153, %c0_50, %c0_51], %156 {strides = array<i32>} : memref<8x2x128xf32, #tpu.memory_space<vmem>>, vector<1x2x128xf32>,
    %c4_i32 = arith.constant 4 : i32
    %157 = arith.index_cast %c4_i32 : i32 to index
    %c0_52 = arith.constant 0 : index
    %c0_53 = arith.constant 0 : index
    %158 = vector.load %arg8[%157, %c0_52, %c0_53] : memref<8x2x384xf32, #tpu.memory_space<vmem>>, vector<1x2x384xf32>
    %159 = vector.shape_cast %158 : vector<1x2x384xf32> to vector<2x384xf32>
    %c0_54 = arith.constant 0 : index
    %c0_55 = arith.constant 0 : index
    %160 = vector.load %arg3[%c0_54, %c0_55] : memref<128x384xf32, #tpu.memory_space<vmem>>, vector<128x384xf32>
    %cst_56 = arith.constant dense<0.000000e+00> : vector<2x384xf32>
    %161 = tpu.matmul %152, %160, %cst_56 {dimension_numbers = #tpu.dot_dimension_numbers<[1], [0], [0], [1], [0, 0, 1, 1], [], []>} : vector<2x128xf32>, vector<128x384xf32>, vector<2x384xf32> -> vector<2x384xf32>
    %162 = vector.extract_strided_slice %159 {offsets = [0, 0], sizes = [2, 128], strides = [1, 1]} : vector<2x384xf32> to vector<2x128xf32>
    %163 = vector.extract_strided_slice %161 {offsets = [0, 0], sizes = [2, 128], strides = [1, 1]} : vector<2x384xf32> to vector<2x128xf32>
    %164 = arith.addf %162, %163 : vector<2x128xf32>
    %165 = arith.negf %164 : vector<2x128xf32>
    %166 = math.exp %165 : vector<2x128xf32>
    %cst_57 = arith.constant 1.000000e+00 : f32
    %167 = vector.broadcast %cst_57 : f32 to vector<2x128xf32>
    %168 = arith.addf %167, %166 : vector<2x128xf32>
    %169 = arith.divf %167, %168 : vector<2x128xf32>
    %170 = vector.extract_strided_slice %159 {offsets = [0, 128], sizes = [2, 128], strides = [1, 1]} : vector<2x384xf32> to vector<2x128xf32>
    %171 = vector.extract_strided_slice %161 {offsets = [0, 128], sizes = [2, 128], strides = [1, 1]} : vector<2x384xf32> to vector<2x128xf32>
    %172 = arith.addf %170, %171 : vector<2x128xf32>
    %173 = arith.negf %172 : vector<2x128xf32>
    %174 = math.exp %173 : vector<2x128xf32>
    %cst_58 = arith.constant 1.000000e+00 : f32
    %175 = vector.broadcast %cst_58 : f32 to vector<2x128xf32>
    %176 = arith.addf %175, %174 : vector<2x128xf32>
    %177 = arith.divf %175, %176 : vector<2x128xf32>
    %178 = vector.extract_strided_slice %159 {offsets = [0, 256], sizes = [2, 128], strides = [1, 1]} : vector<2x384xf32> to vector<2x128xf32>
    %179 = vector.extract_strided_slice %161 {offsets = [0, 256], sizes = [2, 128], strides = [1, 1]} : vector<2x384xf32> to vector<2x128xf32>
    %180 = arith.addf %179, %11 : vector<2x128xf32>
    %181 = arith.mulf %169, %180 : vector<2x128xf32>
    %182 = arith.addf %178, %181 : vector<2x128xf32>
    %183 = math.tanh %182 : vector<2x128xf32>
    %cst_59 = arith.constant 1.000000e+00 : f32
    %184 = vector.broadcast %cst_59 : f32 to vector<2x128xf32>
    %185 = arith.subf %184, %177 : vector<2x128xf32>
    %186 = arith.mulf %185, %183 : vector<2x128xf32>
    %187 = arith.mulf %177, %152 : vector<2x128xf32>
    %188 = arith.addf %186, %187 : vector<2x128xf32>
    %189 = arith.index_cast %c4_i32 : i32 to index
    %c0_60 = arith.constant 0 : index
    %c0_61 = arith.constant 0 : index
    %190 = vector.load %arg6[%189, %c0_60, %c0_61] : memref<8x2x128xf32, #tpu.memory_space<vmem>>, vector<1x2x128xf32>
    %191 = vector.shape_cast %190 : vector<1x2x128xf32> to vector<2x128xf32>
    %192 = vector.shape_cast %188 : vector<2x128xf32> to vector<1x2x128xf32>
    tpu.vector_store %arg6[%189, %c0_60, %c0_61], %192 {strides = array<i32>} : memref<8x2x128xf32, #tpu.memory_space<vmem>>, vector<1x2x128xf32>,
    %c5_i32 = arith.constant 5 : i32
    %193 = arith.index_cast %c5_i32 : i32 to index
    %c0_62 = arith.constant 0 : index
    %c0_63 = arith.constant 0 : index
    %194 = vector.load %arg8[%193, %c0_62, %c0_63] : memref<8x2x384xf32, #tpu.memory_space<vmem>>, vector<1x2x384xf32>
    %195 = vector.shape_cast %194 : vector<1x2x384xf32> to vector<2x384xf32>
    %c0_64 = arith.constant 0 : index
    %c0_65 = arith.constant 0 : index
    %196 = vector.load %arg3[%c0_64, %c0_65] : memref<128x384xf32, #tpu.memory_space<vmem>>, vector<128x384xf32>
    %cst_66 = arith.constant dense<0.000000e+00> : vector<2x384xf32>
    %197 = tpu.matmul %188, %196, %cst_66 {dimension_numbers = #tpu.dot_dimension_numbers<[1], [0], [0], [1], [0, 0, 1, 1], [], []>} : vector<2x128xf32>, vector<128x384xf32>, vector<2x384xf32> -> vector<2x384xf32>
    %198 = vector.extract_strided_slice %195 {offsets = [0, 0], sizes = [2, 128], strides = [1, 1]} : vector<2x384xf32> to vector<2x128xf32>
    %199 = vector.extract_strided_slice %197 {offsets = [0, 0], sizes = [2, 128], strides = [1, 1]} : vector<2x384xf32> to vector<2x128xf32>
    %200 = arith.addf %198, %199 : vector<2x128xf32>
    %201 = arith.negf %200 : vector<2x128xf32>
    %202 = math.exp %201 : vector<2x128xf32>
    %cst_67 = arith.constant 1.000000e+00 : f32
    %203 = vector.broadcast %cst_67 : f32 to vector<2x128xf32>
    %204 = arith.addf %203, %202 : vector<2x128xf32>
    %205 = arith.divf %203, %204 : vector<2x128xf32>
    %206 = vector.extract_strided_slice %195 {offsets = [0, 128], sizes = [2, 128], strides = [1, 1]} : vector<2x384xf32> to vector<2x128xf32>
    %207 = vector.extract_strided_slice %197 {offsets = [0, 128], sizes = [2, 128], strides = [1, 1]} : vector<2x384xf32> to vector<2x128xf32>
    %208 = arith.addf %206, %207 : vector<2x128xf32>
    %209 = arith.negf %208 : vector<2x128xf32>
    %210 = math.exp %209 : vector<2x128xf32>
    %cst_68 = arith.constant 1.000000e+00 : f32
    %211 = vector.broadcast %cst_68 : f32 to vector<2x128xf32>
    %212 = arith.addf %211, %210 : vector<2x128xf32>
    %213 = arith.divf %211, %212 : vector<2x128xf32>
    %214 = vector.extract_strided_slice %195 {offsets = [0, 256], sizes = [2, 128], strides = [1, 1]} : vector<2x384xf32> to vector<2x128xf32>
    %215 = vector.extract_strided_slice %197 {offsets = [0, 256], sizes = [2, 128], strides = [1, 1]} : vector<2x384xf32> to vector<2x128xf32>
    %216 = arith.addf %215, %11 : vector<2x128xf32>
    %217 = arith.mulf %205, %216 : vector<2x128xf32>
    %218 = arith.addf %214, %217 : vector<2x128xf32>
    %219 = math.tanh %218 : vector<2x128xf32>
    %cst_69 = arith.constant 1.000000e+00 : f32
    %220 = vector.broadcast %cst_69 : f32 to vector<2x128xf32>
    %221 = arith.subf %220, %213 : vector<2x128xf32>
    %222 = arith.mulf %221, %219 : vector<2x128xf32>
    %223 = arith.mulf %213, %188 : vector<2x128xf32>
    %224 = arith.addf %222, %223 : vector<2x128xf32>
    %225 = arith.index_cast %c5_i32 : i32 to index
    %c0_70 = arith.constant 0 : index
    %c0_71 = arith.constant 0 : index
    %226 = vector.load %arg6[%225, %c0_70, %c0_71] : memref<8x2x128xf32, #tpu.memory_space<vmem>>, vector<1x2x128xf32>
    %227 = vector.shape_cast %226 : vector<1x2x128xf32> to vector<2x128xf32>
    %228 = vector.shape_cast %224 : vector<2x128xf32> to vector<1x2x128xf32>
    tpu.vector_store %arg6[%225, %c0_70, %c0_71], %228 {strides = array<i32>} : memref<8x2x128xf32, #tpu.memory_space<vmem>>, vector<1x2x128xf32>,
    %c6_i32 = arith.constant 6 : i32
    %229 = arith.index_cast %c6_i32 : i32 to index
    %c0_72 = arith.constant 0 : index
    %c0_73 = arith.constant 0 : index
    %230 = vector.load %arg8[%229, %c0_72, %c0_73] : memref<8x2x384xf32, #tpu.memory_space<vmem>>, vector<1x2x384xf32>
    %231 = vector.shape_cast %230 : vector<1x2x384xf32> to vector<2x384xf32>
    %c0_74 = arith.constant 0 : index
    %c0_75 = arith.constant 0 : index
    %232 = vector.load %arg3[%c0_74, %c0_75] : memref<128x384xf32, #tpu.memory_space<vmem>>, vector<128x384xf32>
    %cst_76 = arith.constant dense<0.000000e+00> : vector<2x384xf32>
    %233 = tpu.matmul %224, %232, %cst_76 {dimension_numbers = #tpu.dot_dimension_numbers<[1], [0], [0], [1], [0, 0, 1, 1], [], []>} : vector<2x128xf32>, vector<128x384xf32>, vector<2x384xf32> -> vector<2x384xf32>
    %234 = vector.extract_strided_slice %231 {offsets = [0, 0], sizes = [2, 128], strides = [1, 1]} : vector<2x384xf32> to vector<2x128xf32>
    %235 = vector.extract_strided_slice %233 {offsets = [0, 0], sizes = [2, 128], strides = [1, 1]} : vector<2x384xf32> to vector<2x128xf32>
    %236 = arith.addf %234, %235 : vector<2x128xf32>
    %237 = arith.negf %236 : vector<2x128xf32>
    %238 = math.exp %237 : vector<2x128xf32>
    %cst_77 = arith.constant 1.000000e+00 : f32
    %239 = vector.broadcast %cst_77 : f32 to vector<2x128xf32>
    %240 = arith.addf %239, %238 : vector<2x128xf32>
    %241 = arith.divf %239, %240 : vector<2x128xf32>
    %242 = vector.extract_strided_slice %231 {offsets = [0, 128], sizes = [2, 128], strides = [1, 1]} : vector<2x384xf32> to vector<2x128xf32>
    %243 = vector.extract_strided_slice %233 {offsets = [0, 128], sizes = [2, 128], strides = [1, 1]} : vector<2x384xf32> to vector<2x128xf32>
    %244 = arith.addf %242, %243 : vector<2x128xf32>
    %245 = arith.negf %244 : vector<2x128xf32>
    %246 = math.exp %245 : vector<2x128xf32>
    %cst_78 = arith.constant 1.000000e+00 : f32
    %247 = vector.broadcast %cst_78 : f32 to vector<2x128xf32>
    %248 = arith.addf %247, %246 : vector<2x128xf32>
    %249 = arith.divf %247, %248 : vector<2x128xf32>
    %250 = vector.extract_strided_slice %231 {offsets = [0, 256], sizes = [2, 128], strides = [1, 1]} : vector<2x384xf32> to vector<2x128xf32>
    %251 = vector.extract_strided_slice %233 {offsets = [0, 256], sizes = [2, 128], strides = [1, 1]} : vector<2x384xf32> to vector<2x128xf32>
    %252 = arith.addf %251, %11 : vector<2x128xf32>
    %253 = arith.mulf %241, %252 : vector<2x128xf32>
    %254 = arith.addf %250, %253 : vector<2x128xf32>
    %255 = math.tanh %254 : vector<2x128xf32>
    %cst_79 = arith.constant 1.000000e+00 : f32
    %256 = vector.broadcast %cst_79 : f32 to vector<2x128xf32>
    %257 = arith.subf %256, %249 : vector<2x128xf32>
    %258 = arith.mulf %257, %255 : vector<2x128xf32>
    %259 = arith.mulf %249, %224 : vector<2x128xf32>
    %260 = arith.addf %258, %259 : vector<2x128xf32>
    %261 = arith.index_cast %c6_i32 : i32 to index
    %c0_80 = arith.constant 0 : index
    %c0_81 = arith.constant 0 : index
    %262 = vector.load %arg6[%261, %c0_80, %c0_81] : memref<8x2x128xf32, #tpu.memory_space<vmem>>, vector<1x2x128xf32>
    %263 = vector.shape_cast %262 : vector<1x2x128xf32> to vector<2x128xf32>
    %264 = vector.shape_cast %260 : vector<2x128xf32> to vector<1x2x128xf32>
    tpu.vector_store %arg6[%261, %c0_80, %c0_81], %264 {strides = array<i32>} : memref<8x2x128xf32, #tpu.memory_space<vmem>>, vector<1x2x128xf32>,
    %c7_i32 = arith.constant 7 : i32
    %265 = arith.index_cast %c7_i32 : i32 to index
    %c0_82 = arith.constant 0 : index
    %c0_83 = arith.constant 0 : index
    %266 = vector.load %arg8[%265, %c0_82, %c0_83] : memref<8x2x384xf32, #tpu.memory_space<vmem>>, vector<1x2x384xf32>
    %267 = vector.shape_cast %266 : vector<1x2x384xf32> to vector<2x384xf32>
    %c0_84 = arith.constant 0 : index
    %c0_85 = arith.constant 0 : index
    %268 = vector.load %arg3[%c0_84, %c0_85] : memref<128x384xf32, #tpu.memory_space<vmem>>, vector<128x384xf32>
    %cst_86 = arith.constant dense<0.000000e+00> : vector<2x384xf32>
    %269 = tpu.matmul %260, %268, %cst_86 {dimension_numbers = #tpu.dot_dimension_numbers<[1], [0], [0], [1], [0, 0, 1, 1], [], []>} : vector<2x128xf32>, vector<128x384xf32>, vector<2x384xf32> -> vector<2x384xf32>
    %270 = vector.extract_strided_slice %267 {offsets = [0, 0], sizes = [2, 128], strides = [1, 1]} : vector<2x384xf32> to vector<2x128xf32>
    %271 = vector.extract_strided_slice %269 {offsets = [0, 0], sizes = [2, 128], strides = [1, 1]} : vector<2x384xf32> to vector<2x128xf32>
    %272 = arith.addf %270, %271 : vector<2x128xf32>
    %273 = arith.negf %272 : vector<2x128xf32>
    %274 = math.exp %273 : vector<2x128xf32>
    %cst_87 = arith.constant 1.000000e+00 : f32
    %275 = vector.broadcast %cst_87 : f32 to vector<2x128xf32>
    %276 = arith.addf %275, %274 : vector<2x128xf32>
    %277 = arith.divf %275, %276 : vector<2x128xf32>
    %278 = vector.extract_strided_slice %267 {offsets = [0, 128], sizes = [2, 128], strides = [1, 1]} : vector<2x384xf32> to vector<2x128xf32>
    %279 = vector.extract_strided_slice %269 {offsets = [0, 128], sizes = [2, 128], strides = [1, 1]} : vector<2x384xf32> to vector<2x128xf32>
    %280 = arith.addf %278, %279 : vector<2x128xf32>
    %281 = arith.negf %280 : vector<2x128xf32>
    %282 = math.exp %281 : vector<2x128xf32>
    %cst_88 = arith.constant 1.000000e+00 : f32
    %283 = vector.broadcast %cst_88 : f32 to vector<2x128xf32>
    %284 = arith.addf %283, %282 : vector<2x128xf32>
    %285 = arith.divf %283, %284 : vector<2x128xf32>
    %286 = vector.extract_strided_slice %267 {offsets = [0, 256], sizes = [2, 128], strides = [1, 1]} : vector<2x384xf32> to vector<2x128xf32>
    %287 = vector.extract_strided_slice %269 {offsets = [0, 256], sizes = [2, 128], strides = [1, 1]} : vector<2x384xf32> to vector<2x128xf32>
    %288 = arith.addf %287, %11 : vector<2x128xf32>
    %289 = arith.mulf %277, %288 : vector<2x128xf32>
    %290 = arith.addf %286, %289 : vector<2x128xf32>
    %291 = math.tanh %290 : vector<2x128xf32>
    %cst_89 = arith.constant 1.000000e+00 : f32
    %292 = vector.broadcast %cst_89 : f32 to vector<2x128xf32>
    %293 = arith.subf %292, %285 : vector<2x128xf32>
    %294 = arith.mulf %293, %291 : vector<2x128xf32>
    %295 = arith.mulf %285, %260 : vector<2x128xf32>
    %296 = arith.addf %294, %295 : vector<2x128xf32>
    %297 = arith.index_cast %c7_i32 : i32 to index
    %c0_90 = arith.constant 0 : index
    %c0_91 = arith.constant 0 : index
    %298 = vector.load %arg6[%297, %c0_90, %c0_91] : memref<8x2x128xf32, #tpu.memory_space<vmem>>, vector<1x2x128xf32>
    %299 = vector.shape_cast %298 : vector<1x2x128xf32> to vector<2x128xf32>
    %300 = vector.shape_cast %296 : vector<2x128xf32> to vector<1x2x128xf32>
    tpu.vector_store %arg6[%297, %c0_90, %c0_91], %300 {strides = array<i32>} : memref<8x2x128xf32, #tpu.memory_space<vmem>>, vector<1x2x128xf32>,
    %c8_i32 = arith.constant 8 : i32
    %c0_92 = arith.constant 0 : index
    %c0_93 = arith.constant 0 : index
    %301 = vector.load %arg7[%c0_92, %c0_93] : memref<2x128xf32, #tpu.memory_space<vmem>>, vector<2x128xf32>
    tpu.vector_store %arg7[%c0_92, %c0_93], %296 {strides = array<i32>} : memref<2x128xf32, #tpu.memory_space<vmem>>, vector<2x128xf32>,
    return
  }
  func.func @transform_0(%arg0: i32) -> (i32, i32, i32) {
    %c0_i32 = arith.constant 0 : i32
    %c0_i32_0 = arith.constant 0 : i32
    %c0_i32_1 = arith.constant 0 : i32
    return %c0_i32, %arg0, %c0_i32_0 : i32, i32, i32
  }
  func.func @transform_1(%arg0: i32) -> (i32, i32) {
    %c0_i32 = arith.constant 0 : i32
    %c0_i32_0 = arith.constant 0 : i32
    %c0_i32_1 = arith.constant 0 : i32
    return %c0_i32, %c0_i32_0 : i32, i32
  }
  func.func @transform_2(%arg0: i32) -> (i32, i32) {
    %c0_i32 = arith.constant 0 : i32
    %c0_i32_0 = arith.constant 0 : i32
    %c0_i32_1 = arith.constant 0 : i32
    return %c0_i32, %c0_i32_0 : i32, i32
  }
  func.func @transform_3(%arg0: i32) -> (i32, i32) {
    %c0_i32 = arith.constant 0 : i32
    %c0_i32_0 = arith.constant 0 : i32
    %c0_i32_1 = arith.constant 0 : i32
    return %c0_i32, %c0_i32_0 : i32, i32
  }
  func.func @transform_4(%arg0: i32) -> (i32, i32) {
    %c0_i32 = arith.constant 0 : i32
    %c0_i32_0 = arith.constant 0 : i32
    %c0_i32_1 = arith.constant 0 : i32
    return %c0_i32, %c0_i32_0 : i32, i32
  }
  func.func @transform_5(%arg0: i32) -> (i32, i32, i32) {
    %c0_i32 = arith.constant 0 : i32
    %c0_i32_0 = arith.constant 0 : i32
    %c0_i32_1 = arith.constant 0 : i32
    return %c0_i32, %arg0, %c0_i32_0 : i32, i32, i32
  }
  func.func @transform_6(%arg0: i32) -> (i32, i32) {
    %c0_i32 = arith.constant 0 : i32
    %c0_i32_0 = arith.constant 0 : i32
    return %arg0, %c0_i32 : i32, i32
  }
}

</mosaic_0001>

<llo_original>
// kernel: tpu_custom_call.1
$region0: #{tpu_custom_call.1}
  #allocation0 [shape = 'u32[]', space=smem, size = 0x4, offset = 0x4, fixed_abs, tag = 'smem constant byte address 0x4 - core index']
  #allocation1 [shape = 'u32[144,128]{1,0:T(1,128)}', space=vmem, size = 0x12000, scoped, tag = 'internal scratch']
  #allocation2 [shape = 'f32[8,2,384]{2,1,0:T(2,128)}', space=vmem, size = 0x6000, scoped, tag = 'scratch operand']
  %s0 = inlined_call_operand.hbm [shape: f32[8,2,16], index: 0, kind: input, shape index: {}]
  %s1 = inlined_call_operand.hbm [shape: f32[16,384], index: 1, kind: input, shape index: {}]
  %s2 = inlined_call_operand.hbm [shape: f32[128,384], index: 2, kind: input, shape index: {}]
  %s3 = inlined_call_operand.vmem [shape: f32[1,384], index: 3, kind: input, shape index: {}]
  %s4 = inlined_call_operand.vmem [shape: f32[1,128], index: 4, kind: input, shape index: {}]
  %s5 = inlined_call_operand.hbm [shape: f32[8,2,128], index: 5, kind: output, shape index: {0}]
  %s6 = inlined_call_operand.hbm [shape: f32[2,128], index: 6, kind: output, shape index: {1}]
  %7 = xla_tuple %s5, %s6
  %s8 = sld [smem:[#allocation0]]
  $region50: #{tpu_custom_call.1} parent=0
    _
  %s10 = ssub.s32 1, %s8
  %s11 = scalar_select 0, %s10, %s8
  $region1: #{tpu_custom_call.1} parent=0
    #allocation3 [shape = 'u8[8192]{0}', space=vmem, size = 0x2000, scoped, tag = 'input window, operand 0, single buffered']
    #allocation4 [shape = 's32[1]{0}', space=sflag, size = 0x4, scoped, tag = 'scoped memory for tpu_custom_call.1']
    #allocation5 [shape = 's32[1]{0}', space=sflag, size = 0x4, scoped, tag = 'scoped memory for tpu_custom_call.1']
    #allocation6 [shape = 'u8[24576]{0}', space=vmem, size = 0x6000, scoped, tag = 'input window, operand 1, single buffered']
    #allocation7 [shape = 's32[1]{0}', space=sflag, size = 0x4, scoped, tag = 'scoped memory for tpu_custom_call.1']
    #allocation8 [shape = 'u8[196608]{0}', space=vmem, size = 0x30000, scoped, tag = 'input window, operand 2, single buffered']
    #allocation9 [shape = 'u8[8192]{0}', space=vmem, size = 0x2000, scoped, tag = 'output window, operand 0, single buffered']
    #allocation10 [shape = 'u8[1024]{0}', space=vmem, size = 0x400, scoped, tag = 'output window, operand 1, single buffered']
    #allocation11 [shape = 's32[1]{0}', space=sflag, size = 0x4, scoped, tag = 'scoped memory for tpu_custom_call.1']
    %12 = vsyncpa [#allocation4], 0
    %13 = vsyncpa [#allocation7], 0
    %14 = vsyncpa [#allocation5], 0
    %15 = vsyncpa [#allocation11], 0
    // Predicated region
    $region2: #{tpu_custom_call.1} parent=1 // pred_check
      _
    $region3: #{tpu_custom_call.1} parent=1 // pred_check_branch
      %17 = sbr.rel (0) target = $region5
    $region4: #{tpu_custom_call.1} parent=1 // pred_region
      %s19 = ssub.s32 256, 256
      %20 = vsyncadd [#allocation4], %s19
      %s21 = sshll.u32 [#allocation3], 4
      %s22 = int_to_ptr.vmem [resolvable:$true] %s21
      %27 = dma.hbm_to_vmem [thread:$0]  %s0, 256, %s22, [#allocation4], 32, 32, 2
    $region5: #{tpu_custom_call.1} parent=1 // pred_fallthru
      _
    // Predicated region
    $region6: #{tpu_custom_call.1} parent=1 // pred_check
      _
    $region7: #{tpu_custom_call.1} parent=1 // pred_check_branch
      %29 = sbr.rel (0) target = $region9
    $region8: #{tpu_custom_call.1} parent=1 // pred_region
      %s31 = ssub.s32 768, 768
      %32 = vsyncadd [#allocation7], %s31
      %s33 = sshll.u32 [#allocation6], 4
      %s34 = int_to_ptr.vmem [resolvable:$true] %s33
      %39 = dma.hbm_to_vmem [thread:$0]  %s1, 768, %s34, [#allocation7], 384, 384, 24
    $region9: #{tpu_custom_call.1} parent=1 // pred_fallthru
      _
    // Predicated region
    $region10: #{tpu_custom_call.1} parent=1 // pred_check
      _
    $region11: #{tpu_custom_call.1} parent=1 // pred_check_branch
      %41 = sbr.rel (0) target = $region13
    $region12: #{tpu_custom_call.1} parent=1 // pred_region
      %s43 = ssub.s32 6144, 6144
      %44 = vsyncadd [#allocation7], %s43
      %s45 = sshll.u32 [#allocation8], 4
      %s46 = int_to_ptr.vmem [resolvable:$true] %s45
      %51 = dma.hbm_to_vmem [thread:$0]  %s2, 6144, %s46, [#allocation7], 384, 384, 24
    $region13: #{tpu_custom_call.1} parent=1 // pred_fallthru
      _
    // Predicated region
    $region14: #{tpu_custom_call.1} parent=1 // pred_check
      _
    $region15: #{tpu_custom_call.1} parent=1 // pred_check_branch
      %53 = sbr.rel (0) target = $region17
    $region16: #{tpu_custom_call.1} parent=1 // pred_region
      _
    $region17: #{tpu_custom_call.1} parent=1 // pred_fallthru
      _
    // Predicated region
    $region18: #{tpu_custom_call.1} parent=1 // pred_check
      _
    $region19: #{tpu_custom_call.1} parent=1 // pred_check_branch
      %55 = sbr.rel (0) target = $region21
    $region20: #{tpu_custom_call.1} parent=1 // pred_region
      _
    $region21: #{tpu_custom_call.1} parent=1 // pred_fallthru
      _
    // Predicated region
    $region22: #{tpu_custom_call.1} parent=1 // pred_check
      _
    $region23: #{tpu_custom_call.1} parent=1 // pred_check_branch
      %57 = sbr.rel (0) target = $region25
    $region24: #{tpu_custom_call.1} parent=1 // pred_region
      %58 = dma.done [#allocation4], 256
    $region25: #{tpu_custom_call.1} parent=1 // pred_fallthru
      _
    // Predicated region
    $region26: #{tpu_custom_call.1} parent=1 // pred_check
      _
    $region27: #{tpu_custom_call.1} parent=1 // pred_check_branch
      %60 = sbr.rel (0) target = $region29
    $region28: #{tpu_custom_call.1} parent=1 // pred_region
      %61 = dma.done [#allocation7], 768
    $region29: #{tpu_custom_call.1} parent=1 // pred_fallthru
      _
    // Predicated region
    $region30: #{tpu_custom_call.1} parent=1 // pred_check
      _
    $region31: #{tpu_custom_call.1} parent=1 // pred_check_branch
      %63 = sbr.rel (0) target = $region33
    $region32: #{tpu_custom_call.1} parent=1 // pred_region
      %64 = dma.done [#allocation7], 6144
    $region33: #{tpu_custom_call.1} parent=1 // pred_fallthru
      _
    %v65 = vld [vmem:[#allocation3] sm:$0x3]
    %v66 = vld [vmem:[#allocation3 + $0x2] sm:$0x3]
    %v67 = vld [vmem:[#allocation3 + $0x4] sm:$0x3]
    %v68 = vld [vmem:[#allocation3 + $0x6] sm:$0x3]
    %v69 = vld [vmem:[#allocation3 + $0x8] sm:$0x3]
    %v70 = vld [vmem:[#allocation3 + $0xa] sm:$0x3]
    %v71 = vld [vmem:[#allocation3 + $0xc] sm:$0x3]
    %v72 = vld [vmem:[#allocation3 + $0xe] sm:$0x3]
    %v73 = vld [vmem:[#allocation6] sm:$0xff]
    %v74 = vld [vmem:[#allocation6 + $0x8] sm:$0xff]
    %v75 = vld [vmem:[#allocation6 + $0x10] sm:$0xff]
    %v76 = vld [vmem:[#allocation6 + $0x18] sm:$0xff]
    %v77 = vld [vmem:[#allocation6 + $0x20] sm:$0xff]
    %v78 = vld [vmem:[#allocation6 + $0x28] sm:$0xff]
    %v79 = vld [vmem:[%s3] sm:$0x7]
    %v81 = vlaneseq
    %v82 = vshrl.u32 %v81, 7
    %v83 = vsub.s32 0, %v82
    %v84 = vrot.slane %v79, %v83
    %v85 = vlaneseq
    %v86 = vshrl.u32 %v85, 7
    %v87 = vsub.s32 1, %v86
    %v88 = vrot.slane %v79, %v87
    %v89 = vlaneseq
    %v90 = vshrl.u32 %v89, 7
    %v91 = vsub.s32 2, %v90
    %v92 = vrot.slane %v79, %v91
    %v104 = vcombine.low %v65, %v66
    %v105 = vcombine.low %v67, %v68
    %v107 = vunpack.c.l.s4 1983009808
    %v108 = vunpack.c.0.s8 %v107
    %v109 = vlaneseq
    %v110 = vshrl.u32 %v109, 7
    %v111 = vsub.s32 %v108, %v110
    %v112 = vrot.slane %v104, %v111
    %v114 = vunpack.c.l.s4 1983009808
    %v115 = vunpack.c.0.s8 %v114
    %v116 = vlaneseq
    %v117 = vshrl.u32 %v116, 7
    %v118 = vsub.s32 %v115, %v117
    %v119 = vrot.slane %v105, %v118
    %v120 = vcombine.low %v112, %v119
    %v121 = vcombine.low %v69, %v70
    %v122 = vcombine.low %v71, %v72
    %v124 = vunpack.c.l.s4 1983009808
    %v125 = vunpack.c.0.s8 %v124
    %v126 = vlaneseq
    %v127 = vshrl.u32 %v126, 7
    %v128 = vsub.s32 %v125, %v127
    %v129 = vrot.slane %v121, %v128
    %v131 = vunpack.c.l.s4 1983009808
    %v132 = vunpack.c.0.s8 %v131
    %v133 = vlaneseq
    %v134 = vshrl.u32 %v133, 7
    %v135 = vsub.s32 %v132, %v134
    %v136 = vrot.slane %v122, %v135
    %v137 = vcombine.low %v129, %v136
    %vm138 = vcmask 130048
    %v139 = vsel %vm138, %v120, 0
    %v141 = vsel %vm138, %v137, 0
    %143 = vmatprep.subr.mxu0 %v74
    %144 = vmatpush1.msra.mxu0 %v73
    %145 = vmatprep.subr.mxu0 %v77
    %146 = vmatpush1.msra.mxu0 %v76
    %147 = vmatprep.subr.mxu0 0.0
    %148 = vmatpush1.msra.mxu0 0.0
    %149 = vmatprep.subr.mxu0 0.0
    %150 = vmatpush1.msra.mxu0 0.0
    %151 = vmatprep.subr.mxu0 0.0
    %152 = vmatpush1.msra.mxu0 0.0
    %153 = vmatprep.subr.mxu0 0.0
    %154 = vmatpush1.msra.mxu0 0.0
    %155 = vmatprep.subr.mxu0 0.0
    %156 = vmatpush1.msra.mxu0 0.0
    %157 = vmatprep.subr.mxu0 0.0
    %158 = vmatpush1.msra.mxu0 0.0
    %159 = vmatprep.subr.mxu0 0.0
    %160 = vmatpush1.msra.mxu0 0.0
    %161 = vmatprep.subr.mxu0 0.0
    %162 = vmatpush1.msra.mxu0 0.0
    %163 = vmatprep.subr.mxu0 0.0
    %164 = vmatpush1.msra.mxu0 0.0
    %165 = vmatprep.subr.mxu0 0.0
    %166 = vmatpush1.msra.mxu0 0.0
    %167 = vmatprep.subr.mxu0 0.0
    %168 = vmatpush1.msra.mxu0 0.0
    %169 = vmatprep.subr.mxu0 0.0
    %170 = vmatpush1.msra.mxu0 0.0
    %171 = vmatprep.subr.mxu0 0.0
    %172 = vmatpush1.msra.mxu0 0.0
    %173 = vmatprep.subr.mxu0 0.0
    %174 = vmatpush1.msra.mxu0 0.0
    %175 = vmatprep.subr.mxu0 0.0
    %176 = vmatpush1.msra.mxu0 0.0
    %177 = vmatprep.subr.mxu0 0.0
    %178 = vmatpush1.msra.mxu0 0.0
    %179 = vmatprep.subr.mxu0 0.0
    %180 = vmatpush1.msra.mxu0 0.0
    %181 = vmatprep.subr.mxu0 0.0
    %182 = vmatpush1.msra.mxu0 0.0
    %183 = vmatprep.subr.mxu0 0.0
    %184 = vmatpush1.msra.mxu0 0.0
    %185 = vmatprep.subr.mxu0 0.0
    %186 = vmatpush1.msra.mxu0 0.0
    %187 = vmatprep.subr.mxu0 0.0
    %188 = vmatpush1.msra.mxu0 0.0
    %189 = vmatprep.subr.mxu0 0.0
    %190 = vmatpush1.msra.mxu0 0.0
    %191 = vmatprep.subr.mxu0 0.0
    %192 = vmatpush1.msra.mxu0 0.0
    %193 = vmatprep.subr.mxu0 0.0
    %194 = vmatpush1.msra.mxu0 0.0
    %195 = vmatprep.subr.mxu0 0.0
    %196 = vmatpush1.msra.mxu0 0.0
    %197 = vmatprep.subr.mxu0 0.0
    %198 = vmatpush1.msra.mxu0 0.0
    %199 = vmatprep.subr.mxu0 0.0
    %200 = vmatpush1.msra.mxu0 0.0
    %201 = vmatprep.subr.mxu0 0.0
    %202 = vmatpush1.msra.mxu0 0.0
    %203 = vmatprep.subr.mxu0 0.0
    %204 = vmatpush1.msra.mxu0 0.0
    %205 = vmatprep.subr.mxu0 0.0
    %206 = vmatpush1.msra.mxu0 0.0
    %207 = vmatprep.mubr.f32.mxu0 0.0
    %208 = vmatmul.mubr.f32.gmra.mrb[0].mxu0 %v139
    %v209 = vpop.f32.mrb[0].mxu0
    %v210 = vadd.f32 %v84, %v209
    %v211 = vpop.f32.mrb[0].mxu0
    %v212 = vadd.f32 %v88, %v211
    %213 = vmatprep.mubr.f32.mxu0 0.0
    %214 = vmatmul.mubr.f32.gmra.mrb[0].mxu0 %v141
    %v215 = vpop.f32.mrb[0].mxu0
    %v216 = vadd.f32 %v84, %v215
    %v217 = vpop.f32.mrb[0].mxu0
    %v218 = vadd.f32 %v88, %v217
    %219 = vdwg.mxu0
    %220 = vmatprep.subr.mxu0 0.0
    %221 = vmatpush1.msra.mxu0 %v75
    %222 = vmatprep.subr.mxu0 0.0
    %223 = vmatpush1.msra.mxu0 %v78
    %224 = vmatprep.subr.mxu0 0.0
    %225 = vmatpush1.msra.mxu0 0.0
    %226 = vmatprep.subr.mxu0 0.0
    %227 = vmatpush1.msra.mxu0 0.0
    %228 = vmatprep.subr.mxu0 0.0
    %229 = vmatpush1.msra.mxu0 0.0
    %230 = vmatprep.subr.mxu0 0.0
    %231 = vmatpush1.msra.mxu0 0.0
    %232 = vmatprep.subr.mxu0 0.0
    %233 = vmatpush1.msra.mxu0 0.0
    %234 = vmatprep.subr.mxu0 0.0
    %235 = vmatpush1.msra.mxu0 0.0
    %236 = vmatprep.subr.mxu0 0.0
    %237 = vmatpush1.msra.mxu0 0.0
    %238 = vmatprep.subr.mxu0 0.0
    %239 = vmatpush1.msra.mxu0 0.0
    %240 = vmatprep.subr.mxu0 0.0
    %241 = vmatpush1.msra.mxu0 0.0
    %242 = vmatprep.subr.mxu0 0.0
    %243 = vmatpush1.msra.mxu0 0.0
    %244 = vmatprep.subr.mxu0 0.0
    %245 = vmatpush1.msra.mxu0 0.0
    %246 = vmatprep.subr.mxu0 0.0
    %247 = vmatpush1.msra.mxu0 0.0
    %248 = vmatprep.subr.mxu0 0.0
    %249 = vmatpush1.msra.mxu0 0.0
    %250 = vmatprep.subr.mxu0 0.0
    %251 = vmatpush1.msra.mxu0 0.0
    %252 = vmatprep.subr.mxu0 0.0
    %253 = vmatpush1.msra.mxu0 0.0
    %254 = vmatprep.subr.mxu0 0.0
    %255 = vmatpush1.msra.mxu0 0.0
    %256 = vmatprep.subr.mxu0 0.0
    %257 = vmatpush1.msra.mxu0 0.0
    %258 = vmatprep.subr.mxu0 0.0
    %259 = vmatpush1.msra.mxu0 0.0
    %260 = vmatprep.subr.mxu0 0.0
    %261 = vmatpush1.msra.mxu0 0.0
    %262 = vmatprep.subr.mxu0 0.0
    %263 = vmatpush1.msra.mxu0 0.0
    %264 = vmatprep.subr.mxu0 0.0
    %265 = vmatpush1.msra.mxu0 0.0
    %266 = vmatprep.subr.mxu0 0.0
    %267 = vmatpush1.msra.mxu0 0.0
    %268 = vmatprep.subr.mxu0 0.0
    %269 = vmatpush1.msra.mxu0 0.0
    %270 = vmatprep.subr.mxu0 0.0
    %271 = vmatpush1.msra.mxu0 0.0
    %272 = vmatprep.subr.mxu0 0.0
    %273 = vmatpush1.msra.mxu0 0.0
    %274 = vmatprep.subr.mxu0 0.0
    %275 = vmatpush1.msra.mxu0 0.0
    %276 = vmatprep.subr.mxu0 0.0
    %277 = vmatpush1.msra.mxu0 0.0
    %278 = vmatprep.subr.mxu0 0.0
    %279 = vmatpush1.msra.mxu0 0.0
    %280 = vmatprep.subr.mxu0 0.0
    %281 = vmatpush1.msra.mxu0 0.0
    %282 = vmatprep.subr.mxu0 0.0
    %283 = vmatpush1.msra.mxu0 0.0
    %284 = vmatprep.mubr.f32.mxu0 0.0
    %285 = vmatmul.mubr.f32.gmra.mrb[0].mxu0 %v139
    %v286 = vpop.f32.mrb[0].mxu0
    %v287 = vadd.f32 %v92, %v286
    %v288 = vpop.f32.mrb[0].mxu0
    %289 = vmatprep.mubr.f32.mxu0 0.0
    %290 = vmatmul.mubr.f32.gmra.mrb[0].mxu0 %v141
    %v291 = vpop.f32.mrb[0].mxu0
    %v292 = vadd.f32 %v92, %v291
    %v293 = vpop.f32.mrb[0].mxu0
    %294 = vdwg.mxu0
    %v301 = vcombine.low %v210, %v212
    %v302 = vcombine.high %v210, %v212
    %v303 = vcombine.high %v287, %v287
    %v305 = vunpack.c.l.s4 1983009808
    %v306 = vunpack.c.0.s8 %v305
    %v307 = vlaneseq
    %v308 = vshrl.u32 %v307, 7
    %v309 = vsub.s32 %v306, %v308
    %v310 = vrot.slane %v301, %v309
    %v312 = vunpack.c.l.s4 1983009808
    %v313 = vunpack.c.0.s8 %v312
    %v314 = vlaneseq
    %v315 = vshrl.u32 %v314, 7
    %v316 = vsub.s32 %v313, %v315
    %v317 = vrot.slane %v302, %v316
    %v319 = vunpack.c.l.s4 1983009808
    %v320 = vunpack.c.0.s8 %v319
    %v321 = vlaneseq
    %v322 = vshrl.u32 %v321, 7
    %v323 = vsub.s32 %v320, %v322
    %v324 = vrot.slane %v287, %v323
    %v326 = vunpack.c.l.s4 1983009808
    %v327 = vunpack.c.0.s8 %v326
    %v328 = vlaneseq
    %v329 = vshrl.u32 %v328, 7
    %v330 = vsub.s32 %v327, %v329
    %v331 = vrot.slane %v303, %v330
    %v332 = vcombine.low %v310, %v324
    %v333 = vcombine.high %v310, %v324
    %v334 = vcombine.low %v317, %v331
    %v335 = vcombine.high %v317, %v331
    %v336 = vcombine.low %v216, %v218
    %v337 = vcombine.high %v216, %v218
    %v338 = vcombine.high %v292, %v292
    %v340 = vunpack.c.l.s4 1983009808
    %v341 = vunpack.c.0.s8 %v340
    %v342 = vlaneseq
    %v343 = vshrl.u32 %v342, 7
    %v344 = vsub.s32 %v341, %v343
    %v345 = vrot.slane %v336, %v344
    %v347 = vunpack.c.l.s4 1983009808
    %v348 = vunpack.c.0.s8 %v347
    %v349 = vlaneseq
    %v350 = vshrl.u32 %v349, 7
    %v351 = vsub.s32 %v348, %v350
    %v352 = vrot.slane %v337, %v351
    %v354 = vunpack.c.l.s4 1983009808
    %v355 = vunpack.c.0.s8 %v354
    %v356 = vlaneseq
    %v357 = vshrl.u32 %v356, 7
    %v358 = vsub.s32 %v355, %v357
    %v359 = vrot.slane %v292, %v358
    %v361 = vunpack.c.l.s4 1983009808
    %v362 = vunpack.c.0.s8 %v361
    %v363 = vlaneseq
    %v364 = vshrl.u32 %v363, 7
    %v365 = vsub.s32 %v362, %v364
    %v366 = vrot.slane %v338, %v365
    %v367 = vcombine.low %v345, %v359
    %v368 = vcombine.high %v345, %v359
    %v369 = vcombine.low %v352, %v366
    %v370 = vcombine.high %v352, %v366
    %379 = vst [vmem:[#allocation2] sm:$0x3f] %v332
    %380 = vst [vmem:[#allocation2 + $0x6] sm:$0x3f] %v333
    %381 = vst [vmem:[#allocation2 + $0xc] sm:$0x3f] %v334
    %382 = vst [vmem:[#allocation2 + $0x12] sm:$0x3f] %v335
    %383 = vst [vmem:[#allocation2 + $0x18] sm:$0x3f] %v367
    %384 = vst [vmem:[#allocation2 + $0x1e] sm:$0x3f] %v368
    %385 = vst [vmem:[#allocation2 + $0x24] sm:$0x3f] %v369
    %386 = vst [vmem:[#allocation2 + $0x2a] sm:$0x3f] %v370
    %v387 = vld [vmem:[%s4] sm:$0x1]
    %v389 = vlaneseq
    %v390 = vshrl.u32 %v389, 7
    %v391 = vsub.s32 0, %v390
    %v392 = vrot.slane %v387, %v391
    %v394 = vld [vmem:[#allocation2] sm:$0x3f]
    %v395 = vld [vmem:[#allocation8] sm:$0xff]
    %v396 = vld [vmem:[#allocation8 + $0x8] sm:$0xff]
    %v397 = vld [vmem:[#allocation8 + $0x10] sm:$0xff]
    %v398 = vld [vmem:[#allocation8 + $0x18] sm:$0xff]
    %v399 = vld [vmem:[#allocation8 + $0x20] sm:$0xff]
    %v400 = vld [vmem:[#allocation8 + $0x28] sm:$0xff]
    %v401 = vld [vmem:[#allocation8 + $0x30] sm:$0xff]
    %v402 = vld [vmem:[#allocation8 + $0x38] sm:$0xff]
    %v403 = vld [vmem:[#allocation8 + $0x40] sm:$0xff]
    %v404 = vld [vmem:[#allocation8 + $0x48] sm:$0xff]
    %v405 = vld [vmem:[#allocation8 + $0x50] sm:$0xff]
    %v406 = vld [vmem:[#allocation8 + $0x58] sm:$0xff]
    %v407 = vld [vmem:[#allocation8 + $0x60] sm:$0xff]
    %v408 = vld [vmem:[#allocation8 + $0x68] sm:$0xff]
    %v409 = vld [vmem:[#allocation8 + $0x70] sm:$0xff]
    %v410 = vld [vmem:[#allocation8 + $0x78] sm:$0xff]
    %v411 = vld [vmem:[#allocation8 + $0x80] sm:$0xff]
    %v412 = vld [vmem:[#allocation8 + $0x88] sm:$0xff]
    %v413 = vld [vmem:[#allocation8 + $0x90] sm:$0xff]
    %v414 = vld [vmem:[#allocation8 + $0x98] sm:$0xff]
    %v415 = vld [vmem:[#allocation8 + $0xa0] sm:$0xff]
    %v416 = vld [vmem:[#allocation8 + $0xa8] sm:$0xff]
    %v417 = vld [vmem:[#allocation8 + $0xb0] sm:$0xff]
    %v418 = vld [vmem:[#allocation8 + $0xb8] sm:$0xff]
    %v419 = vld [vmem:[#allocation8 + $0xc0] sm:$0xff]
    %v420 = vld [vmem:[#allocation8 + $0xc8] sm:$0xff]
    %v421 = vld [vmem:[#allocation8 + $0xd0] sm:$0xff]
    %v422 = vld [vmem:[#allocation8 + $0xd8] sm:$0xff]
    %v423 = vld [vmem:[#allocation8 + $0xe0] sm:$0xff]
    %v424 = vld [vmem:[#allocation8 + $0xe8] sm:$0xff]
    %v425 = vld [vmem:[#allocation8 + $0xf0] sm:$0xff]
    %v426 = vld [vmem:[#allocation8 + $0xf8] sm:$0xff]
    %v427 = vld [vmem:[#allocation8 + $0x100] sm:$0xff]
    %v428 = vld [vmem:[#allocation8 + $0x108] sm:$0xff]
    %v429 = vld [vmem:[#allocation8 + $0x110] sm:$0xff]
    %v430 = vld [vmem:[#allocation8 + $0x118] sm:$0xff]
    %v431 = vld [vmem:[#allocation8 + $0x120] sm:$0xff]
    %v432 = vld [vmem:[#allocation8 + $0x128] sm:$0xff]
    %v433 = vld [vmem:[#allocation8 + $0x130] sm:$0xff]
    %v434 = vld [vmem:[#allocation8 + $0x138] sm:$0xff]
    %v435 = vld [vmem:[#allocation8 + $0x140] sm:$0xff]
    %v436 = vld [vmem:[#allocation8 + $0x148] sm:$0xff]
    %v437 = vld [vmem:[#allocation8 + $0x150] sm:$0xff]
    %v438 = vld [vmem:[#allocation8 + $0x158] sm:$0xff]
    %v439 = vld [vmem:[#allocation8 + $0x160] sm:$0xff]
    %v440 = vld [vmem:[#allocation8 + $0x168] sm:$0xff]
    %v441 = vld [vmem:[#allocation8 + $0x170] sm:$0xff]
    %v442 = vld [vmem:[#allocation8 + $0x178] sm:$0xff]
    %443 = vmatprep.subr.mxu0 %v396
    %444 = vmatpush1.msra.mxu0 %v395
    %445 = vmatprep.subr.mxu0 %v399
    %446 = vmatpush1.msra.mxu0 %v398
    %447 = vmatprep.subr.mxu0 %v402
    %448 = vmatpush1.msra.mxu0 %v401
    %449 = vmatprep.subr.mxu0 %v405
    %450 = vmatpush1.msra.mxu0 %v404
    %451 = vmatprep.subr.mxu0 %v408
    %452 = vmatpush1.msra.mxu0 %v407
    %453 = vmatprep.subr.mxu0 %v411
    %454 = vmatpush1.msra.mxu0 %v410
    %455 = vmatprep.subr.mxu0 %v414
    %456 = vmatpush1.msra.mxu0 %v413
    %457 = vmatprep.subr.mxu0 %v417
    %458 = vmatpush1.msra.mxu0 %v416
    %459 = vmatprep.subr.mxu0 %v420
    %460 = vmatpush1.msra.mxu0 %v419
    %461 = vmatprep.subr.mxu0 %v423
    %462 = vmatpush1.msra.mxu0 %v422
    %463 = vmatprep.subr.mxu0 %v426
    %464 = vmatpush1.msra.mxu0 %v425
    %465 = vmatprep.subr.mxu0 %v429
    %466 = vmatpush1.msra.mxu0 %v428
    %467 = vmatprep.subr.mxu0 %v432
    %468 = vmatpush1.msra.mxu0 %v431
    %469 = vmatprep.subr.mxu0 %v435
    %470 = vmatpush1.msra.mxu0 %v434
    %471 = vmatprep.subr.mxu0 %v438
    %472 = vmatpush1.msra.mxu0 %v437
    %473 = vmatprep.subr.mxu0 %v441
    %474 = vmatpush1.msra.mxu0 %v440
    %475 = vmatprep.subr.mxu0 0.0
    %476 = vmatpush1.msra.mxu0 0.0
    %477 = vmatprep.subr.mxu0 0.0
    %478 = vmatpush1.msra.mxu0 0.0
    %479 = vmatprep.subr.mxu0 0.0
    %480 = vmatpush1.msra.mxu0 0.0
    %481 = vmatprep.subr.mxu0 0.0
    %482 = vmatpush1.msra.mxu0 0.0
    %483 = vmatprep.subr.mxu0 0.0
    %484 = vmatpush1.msra.mxu0 0.0
    %485 = vmatprep.subr.mxu0 0.0
    %486 = vmatpush1.msra.mxu0 0.0
    %487 = vmatprep.subr.mxu0 0.0
    %488 = vmatpush1.msra.mxu0 0.0
    %489 = vmatprep.subr.mxu0 0.0
    %490 = vmatpush1.msra.mxu0 0.0
    %491 = vmatprep.subr.mxu0 0.0
    %492 = vmatpush1.msra.mxu0 0.0
    %493 = vmatprep.subr.mxu0 0.0
    %494 = vmatpush1.msra.mxu0 0.0
    %495 = vmatprep.subr.mxu0 0.0
    %496 = vmatpush1.msra.mxu0 0.0
    %497 = vmatprep.subr.mxu0 0.0
    %498 = vmatpush1.msra.mxu0 0.0
    %499 = vmatprep.subr.mxu0 0.0
    %500 = vmatpush1.msra.mxu0 0.0
    %501 = vmatprep.subr.mxu0 0.0
    %502 = vmatpush1.msra.mxu0 0.0
    %503 = vmatprep.subr.mxu0 0.0
    %504 = vmatpush1.msra.mxu0 0.0
    %505 = vmatprep.subr.mxu0 0.0
    %506 = vmatpush1.msra.mxu0 0.0
    %507 = vmatprep.mubr.f32.mxu0 0.0
    %508 = vmatmul.mubr.f32.gmra.mrb[0].mxu0 0.0
    %v509 = vpop.f32.mrb[0].mxu0
    %v510 = vadd.f32 0.0, %v509
    %v511 = vpop.f32.mrb[0].mxu0
    %v512 = vadd.f32 0.0, %v511
    %513 = vdwg.mxu0
    %514 = vmatprep.subr.mxu0 0.0
    %515 = vmatpush1.msra.mxu0 %v397
    %516 = vmatprep.subr.mxu0 0.0
    %517 = vmatpush1.msra.mxu0 %v400
    %518 = vmatprep.subr.mxu0 0.0
    %519 = vmatpush1.msra.mxu0 %v403
    %520 = vmatprep.subr.mxu0 0.0
    %521 = vmatpush1.msra.mxu0 %v406
    %522 = vmatprep.subr.mxu0 0.0
    %523 = vmatpush1.msra.mxu0 %v409
    %524 = vmatprep.subr.mxu0 0.0
    %525 = vmatpush1.msra.mxu0 %v412
    %526 = vmatprep.subr.mxu0 0.0
    %527 = vmatpush1.msra.mxu0 %v415
    %528 = vmatprep.subr.mxu0 0.0
    %529 = vmatpush1.msra.mxu0 %v418
    %530 = vmatprep.subr.mxu0 0.0
    %531 = vmatpush1.msra.mxu0 %v421
    %532 = vmatprep.subr.mxu0 0.0
    %533 = vmatpush1.msra.mxu0 %v424
    %534 = vmatprep.subr.mxu0 0.0
    %535 = vmatpush1.msra.mxu0 %v427
    %536 = vmatprep.subr.mxu0 0.0
    %537 = vmatpush1.msra.mxu0 %v430
    %538 = vmatprep.subr.mxu0 0.0
    %539 = vmatpush1.msra.mxu0 %v433
    %540 = vmatprep.subr.mxu0 0.0
    %541 = vmatpush1.msra.mxu0 %v436
    %542 = vmatprep.subr.mxu0 0.0
    %543 = vmatpush1.msra.mxu0 %v439
    %544 = vmatprep.subr.mxu0 0.0
    %545 = vmatpush1.msra.mxu0 %v442
    %546 = vmatprep.subr.mxu0 0.0
    %547 = vmatpush1.msra.mxu0 0.0
    %548 = vmatprep.subr.mxu0 0.0
    %549 = vmatpush1.msra.mxu0 0.0
    %550 = vmatprep.subr.mxu0 0.0
    %551 = vmatpush1.msra.mxu0 0.0
    %552 = vmatprep.subr.mxu0 0.0
    %553 = vmatpush1.msra.mxu0 0.0
    %554 = vmatprep.subr.mxu0 0.0
    %555 = vmatpush1.msra.mxu0 0.0
    %556 = vmatprep.subr.mxu0 0.0
    %557 = vmatpush1.msra.mxu0 0.0
    %558 = vmatprep.subr.mxu0 0.0
    %559 = vmatpush1.msra.mxu0 0.0
    %560 = vmatprep.subr.mxu0 0.0
    %561 = vmatpush1.msra.mxu0 0.0
    %562 = vmatprep.subr.mxu0 0.0
    %563 = vmatpush1.msra.mxu0 0.0
    %564 = vmatprep.subr.mxu0 0.0
    %565 = vmatpush1.msra.mxu0 0.0
    %566 = vmatprep.subr.mxu0 0.0
    %567 = vmatpush1.msra.mxu0 0.0
    %568 = vmatprep.subr.mxu0 0.0
    %569 = vmatpush1.msra.mxu0 0.0
    %570 = vmatprep.subr.mxu0 0.0
    %571 = vmatpush1.msra.mxu0 0.0
    %572 = vmatprep.subr.mxu0 0.0
    %573 = vmatpush1.msra.mxu0 0.0
    %574 = vmatprep.subr.mxu0 0.0
    %575 = vmatpush1.msra.mxu0 0.0
    %576 = vmatprep.subr.mxu0 0.0
    %577 = vmatpush1.msra.mxu0 0.0
    %578 = vmatprep.mubr.f32.mxu0 0.0
    %579 = vmatmul.mubr.f32.gmra.mrb[0].mxu0 0.0
    %v580 = vpop.f32.mrb[0].mxu0
    %v581 = vadd.f32 0.0, %v580
    %v582 = vpop.f32.mrb[0].mxu0
    %583 = vdwg.mxu0
    %v584 = vadd.f32 %v394, %v510
    %v585 = vxor.u32 %v584, 2147483648
    %v586 = vmul.f32 %v585, 1.442695
    %v587 = vpow.pop %v586
    %v588 = vadd.f32 %v587, 1.0
    %v589 = vrcp.pop %v588
    %v590 = vmul.f32 1.0, %v589
    %v592 = vrot.slane %v394, 2
    %v594 = vadd.f32 %v592, %v512
    %v595 = vxor.u32 %v594, 2147483648
    %v596 = vmul.f32 %v595, 1.442695
    %v597 = vpow.pop %v596
    %v598 = vadd.f32 %v597, 1.0
    %v599 = vrcp.pop %v598
    %v600 = vmul.f32 1.0, %v599
    %v601 = vadd.f32 %v581, %v392
    %v602 = vmul.f32 %v590, %v601
    %v603 = vrot.slane %v394, 4
    %v605 = vadd.f32 %v603, %v602
    %v606 = vtanh.pop %v605
    %v607 = vsub.f32 1.0, %v600
    %v608 = vmul.f32 %v607, %v606
    %v609 = vmul.f32 %v600, 0.0
    %v610 = vadd.f32 %v608, %v609
    %611 = vst [vmem:[#allocation9] sm:$0x3] %v610
    %s612 = scalar_lea.vmem [#allocation2], 6
    %v613 = vld [vmem:[%s612] sm:$0x3f]
    %v614 = vld [vmem:[#allocation8] sm:$0xff]
    %v615 = vld [vmem:[#allocation8 + $0x8] sm:$0xff]
    %v616 = vld [vmem:[#allocation8 + $0x10] sm:$0xff]
    %v617 = vld [vmem:[#allocation8 + $0x18] sm:$0xff]
    %v618 = vld [vmem:[#allocation8 + $0x20] sm:$0xff]
    %v619 = vld [vmem:[#allocation8 + $0x28] sm:$0xff]
    %v620 = vld [vmem:[#allocation8 + $0x30] sm:$0xff]
    %v621 = vld [vmem:[#allocation8 + $0x38] sm:$0xff]
    %v622 = vld [vmem:[#allocation8 + $0x40] sm:$0xff]
    %v623 = vld [vmem:[#allocation8 + $0x48] sm:$0xff]
    %v624 = vld [vmem:[#allocation8 + $0x50] sm:$0xff]
    %v625 = vld [vmem:[#allocation8 + $0x58] sm:$0xff]
    %v626 = vld [vmem:[#allocation8 + $0x60] sm:$0xff]
    %v627 = vld [vmem:[#allocation8 + $0x68] sm:$0xff]
    %v628 = vld [vmem:[#allocation8 + $0x70] sm:$0xff]
    %v629 = vld [vmem:[#allocation8 + $0x78] sm:$0xff]
    %v630 = vld [vmem:[#allocation8 + $0x80] sm:$0xff]
    %v631 = vld [vmem:[#allocation8 + $0x88] sm:$0xff]
    %v632 = vld [vmem:[#allocation8 + $0x90] sm:$0xff]
    %v633 = vld [vmem:[#allocation8 + $0x98] sm:$0xff]
    %v634 = vld [vmem:[#allocation8 + $0xa0] sm:$0xff]
    %v635 = vld [vmem:[#allocation8 + $0xa8] sm:$0xff]
    %v636 = vld [vmem:[#allocation8 + $0xb0] sm:$0xff]
    %v637 = vld [vmem:[#allocation8 + $0xb8] sm:$0xff]
    %v638 = vld [vmem:[#allocation8 + $0xc0] sm:$0xff]
    %v639 = vld [vmem:[#allocation8 + $0xc8] sm:$0xff]
    %v640 = vld [vmem:[#allocation8 + $0xd0] sm:$0xff]
    %v641 = vld [vmem:[#allocation8 + $0xd8] sm:$0xff]
    %v642 = vld [vmem:[#allocation8 + $0xe0] sm:$0xff]
    %v643 = vld [vmem:[#allocation8 + $0xe8] sm:$0xff]
    %v644 = vld [vmem:[#allocation8 + $0xf0] sm:$0xff]
    %v645 = vld [vmem:[#allocation8 + $0xf8] sm:$0xff]
    %v646 = vld [vmem:[#allocation8 + $0x100] sm:$0xff]
    %v647 = vld [vmem:[#allocation8 + $0x108] sm:$0xff]
    %v648 = vld [vmem:[#allocation8 + $0x110] sm:$0xff]
    %v649 = vld [vmem:[#allocation8 + $0x118] sm:$0xff]
    %v650 = vld [vmem:[#allocation8 + $0x120] sm:$0xff]
    %v651 = vld [vmem:[#allocation8 + $0x128] sm:$0xff]
    %v652 = vld [vmem:[#allocation8 + $0x130] sm:$0xff]
    %v653 = vld [vmem:[#allocation8 + $0x138] sm:$0xff]
    %v654 = vld [vmem:[#allocation8 + $0x140] sm:$0xff]
    %v655 = vld [vmem:[#allocation8 + $0x148] sm:$0xff]
    %v656 = vld [vmem:[#allocation8 + $0x150] sm:$0xff]
    %v657 = vld [vmem:[#allocation8 + $0x158] sm:$0xff]
    %v658 = vld [vmem:[#allocation8 + $0x160] sm:$0xff]
    %v659 = vld [vmem:[#allocation8 + $0x168] sm:$0xff]
    %v660 = vld [vmem:[#allocation8 + $0x170] sm:$0xff]
    %v661 = vld [vmem:[#allocation8 + $0x178] sm:$0xff]
    %662 = vmatprep.subr.mxu0 %v615
    %663 = vmatpush1.msra.mxu0 %v614
    %664 = vmatprep.subr.mxu0 %v618
    %665 = vmatpush1.msra.mxu0 %v617
    %666 = vmatprep.subr.mxu0 %v621
    %667 = vmatpush1.msra.mxu0 %v620
    %668 = vmatprep.subr.mxu0 %v624
    %669 = vmatpush1.msra.mxu0 %v623
    %670 = vmatprep.subr.mxu0 %v627
    %671 = vmatpush1.msra.mxu0 %v626
    %672 = vmatprep.subr.mxu0 %v630
    %673 = vmatpush1.msra.mxu0 %v629
    %674 = vmatprep.subr.mxu0 %v633
    %675 = vmatpush1.msra.mxu0 %v632
    %676 = vmatprep.subr.mxu0 %v636
    %677 = vmatpush1.msra.mxu0 %v635
    %678 = vmatprep.subr.mxu0 %v639
    %679 = vmatpush1.msra.mxu0 %v638
    %680 = vmatprep.subr.mxu0 %v642
    %681 = vmatpush1.msra.mxu0 %v641
    %682 = vmatprep.subr.mxu0 %v645
    %683 = vmatpush1.msra.mxu0 %v644
    %684 = vmatprep.subr.mxu0 %v648
    %685 = vmatpush1.msra.mxu0 %v647
    %686 = vmatprep.subr.mxu0 %v651
    %687 = vmatpush1.msra.mxu0 %v650
    %688 = vmatprep.subr.mxu0 %v654
    %689 = vmatpush1.msra.mxu0 %v653
    %690 = vmatprep.subr.mxu0 %v657
    %691 = vmatpush1.msra.mxu0 %v656
    %692 = vmatprep.subr.mxu0 %v660
    %693 = vmatpush1.msra.mxu0 %v659
    %694 = vmatprep.subr.mxu0 0.0
    %695 = vmatpush1.msra.mxu0 0.0
    %696 = vmatprep.subr.mxu0 0.0
    %697 = vmatpush1.msra.mxu0 0.0
    %698 = vmatprep.subr.mxu0 0.0
    %699 = vmatpush1.msra.mxu0 0.0
    %700 = vmatprep.subr.mxu0 0.0
    %701 = vmatpush1.msra.mxu0 0.0
    %702 = vmatprep.subr.mxu0 0.0
    %703 = vmatpush1.msra.mxu0 0.0
    %704 = vmatprep.subr.mxu0 0.0
    %705 = vmatpush1.msra.mxu0 0.0
    %706 = vmatprep.subr.mxu0 0.0
    %707 = vmatpush1.msra.mxu0 0.0
    %708 = vmatprep.subr.mxu0 0.0
    %709 = vmatpush1.msra.mxu0 0.0
    %710 = vmatprep.subr.mxu0 0.0
    %711 = vmatpush1.msra.mxu0 0.0
    %712 = vmatprep.subr.mxu0 0.0
    %713 = vmatpush1.msra.mxu0 0.0
    %714 = vmatprep.subr.mxu0 0.0
    %715 = vmatpush1.msra.mxu0 0.0
    %716 = vmatprep.subr.mxu0 0.0
    %717 = vmatpush1.msra.mxu0 0.0
    %718 = vmatprep.subr.mxu0 0.0
    %719 = vmatpush1.msra.mxu0 0.0
    %720 = vmatprep.subr.mxu0 0.0
    %721 = vmatpush1.msra.mxu0 0.0
    %722 = vmatprep.subr.mxu0 0.0
    %723 = vmatpush1.msra.mxu0 0.0
    %724 = vmatprep.subr.mxu0 0.0
    %725 = vmatpush1.msra.mxu0 0.0
    %726 = vmatprep.mubr.f32.mxu0 0.0
    %727 = vmatmul.mubr.f32.gmra.mrb[0].mxu0 %v610
    %v728 = vpop.f32.mrb[0].mxu0
    %v729 = vadd.f32 0.0, %v728
    %v730 = vpop.f32.mrb[0].mxu0
    %v731 = vadd.f32 0.0, %v730
    %732 = vdwg.mxu0
    %733 = vmatprep.subr.mxu0 0.0
    %734 = vmatpush1.msra.mxu0 %v616
    %735 = vmatprep.subr.mxu0 0.0
    %736 = vmatpush1.msra.mxu0 %v619
    %737 = vmatprep.subr.mxu0 0.0
    %738 = vmatpush1.msra.mxu0 %v622
    %739 = vmatprep.subr.mxu0 0.0
    %740 = vmatpush1.msra.mxu0 %v625
    %741 = vmatprep.subr.mxu0 0.0
    %742 = vmatpush1.msra.mxu0 %v628
    %743 = vmatprep.subr.mxu0 0.0
    %744 = vmatpush1.msra.mxu0 %v631
    %745 = vmatprep.subr.mxu0 0.0
    %746 = vmatpush1.msra.mxu0 %v634
    %747 = vmatprep.subr.mxu0 0.0
    %748 = vmatpush1.msra.mxu0 %v637
    %749 = vmatprep.subr.mxu0 0.0
    %750 = vmatpush1.msra.mxu0 %v640
    %751 = vmatprep.subr.mxu0 0.0
    %752 = vmatpush1.msra.mxu0 %v643
    %753 = vmatprep.subr.mxu0 0.0
    %754 = vmatpush1.msra.mxu0 %v646
    %755 = vmatprep.subr.mxu0 0.0
    %756 = vmatpush1.msra.mxu0 %v649
    %757 = vmatprep.subr.mxu0 0.0
    %758 = vmatpush1.msra.mxu0 %v652
    %759 = vmatprep.subr.mxu0 0.0
    %760 = vmatpush1.msra.mxu0 %v655
    %761 = vmatprep.subr.mxu0 0.0
    %762 = vmatpush1.msra.mxu0 %v658
    %763 = vmatprep.subr.mxu0 0.0
    %764 = vmatpush1.msra.mxu0 %v661
    %765 = vmatprep.subr.mxu0 0.0
    %766 = vmatpush1.msra.mxu0 0.0
    %767 = vmatprep.subr.mxu0 0.0
    %768 = vmatpush1.msra.mxu0 0.0
    %769 = vmatprep.subr.mxu0 0.0
    %770 = vmatpush1.msra.mxu0 0.0
    %771 = vmatprep.subr.mxu0 0.0
    %772 = vmatpush1.msra.mxu0 0.0
    %773 = vmatprep.subr.mxu0 0.0
    %774 = vmatpush1.msra.mxu0 0.0
    %775 = vmatprep.subr.mxu0 0.0
    %776 = vmatpush1.msra.mxu0 0.0
    %777 = vmatprep.subr.mxu0 0.0
    %778 = vmatpush1.msra.mxu0 0.0
    %779 = vmatprep.subr.mxu0 0.0
    %780 = vmatpush1.msra.mxu0 0.0
    %781 = vmatprep.subr.mxu0 0.0
    %782 = vmatpush1.msra.mxu0 0.0
    %783 = vmatprep.subr.mxu0 0.0
    %784 = vmatpush1.msra.mxu0 0.0
    %785 = vmatprep.subr.mxu0 0.0
    %786 = vmatpush1.msra.mxu0 0.0
    %787 = vmatprep.subr.mxu0 0.0
    %788 = vmatpush1.msra.mxu0 0.0
    %789 = vmatprep.subr.mxu0 0.0
    %790 = vmatpush1.msra.mxu0 0.0
    %791 = vmatprep.subr.mxu0 0.0
    %792 = vmatpush1.msra.mxu0 0.0
    %793 = vmatprep.subr.mxu0 0.0
    %794 = vmatpush1.msra.mxu0 0.0
    %795 = vmatprep.subr.mxu0 0.0
    %796 = vmatpush1.msra.mxu0 0.0
    %797 = vmatprep.mubr.f32.mxu0 0.0
    %798 = vmatmul.mubr.f32.gmra.mrb[0].mxu0 %v610
    %v799 = vpop.f32.mrb[0].mxu0
    %v800 = vadd.f32 0.0, %v799
    %v801 = vpop.f32.mrb[0].mxu0
    %802 = vdwg.mxu0
    %v803 = vadd.f32 %v613, %v729
    %v804 = vxor.u32 %v803, 2147483648
    %v805 = vmul.f32 %v804, 1.442695
    %v806 = vpow.pop %v805
    %v807 = vadd.f32 %v806, 1.0
    %v808 = vrcp.pop %v807
    %v809 = vmul.f32 1.0, %v808
    %v811 = vrot.slane %v613, 2
    %v813 = vadd.f32 %v811, %v731
    %v814 = vxor.u32 %v813, 2147483648
    %v815 = vmul.f32 %v814, 1.442695
    %v816 = vpow.pop %v815
    %v817 = vadd.f32 %v816, 1.0
    %v818 = vrcp.pop %v817
    %v819 = vmul.f32 1.0, %v818
    %v820 = vadd.f32 %v800, %v392
    %v821 = vmul.f32 %v809, %v820
    %v822 = vrot.slane %v613, 4
    %v824 = vadd.f32 %v822, %v821
    %v825 = vtanh.pop %v824
    %v826 = vsub.f32 1.0, %v819
    %v827 = vmul.f32 %v826, %v825
    %v828 = vmul.f32 %v819, %v610
    %v829 = vadd.f32 %v827, %v828
    %s830 = scalar_lea.vmem [#allocation9], 2
    %831 = vst [vmem:[%s830] sm:$0x3] %v829
    %s832 = scalar_lea.vmem [#allocation2], 12
    %v833 = vld [vmem:[%s832] sm:$0x3f]
    %v834 = vld [vmem:[#allocation8] sm:$0xff]
    %v835 = vld [vmem:[#allocation8 + $0x8] sm:$0xff]
    %v836 = vld [vmem:[#allocation8 + $0x10] sm:$0xff]
    %v837 = vld [vmem:[#allocation8 + $0x18] sm:$0xff]
    %v838 = vld [vmem:[#allocation8 + $0x20] sm:$0xff]
    %v839 = vld [vmem:[#allocation8 + $0x28] sm:$0xff]
    %v840 = vld [vmem:[#allocation8 + $0x30] sm:$0xff]
    %v841 = vld [vmem:[#allocation8 + $0x38] sm:$0xff]
    %v842 = vld [vmem:[#allocation8 + $0x40] sm:$0xff]
    %v843 = vld [vmem:[#allocation8 + $0x48] sm:$0xff]
    %v844 = vld [vmem:[#allocation8 + $0x50] sm:$0xff]
    %v845 = vld [vmem:[#allocation8 + $0x58] sm:$0xff]
    %v846 = vld [vmem:[#allocation8 + $0x60] sm:$0xff]
    %v847 = vld [vmem:[#allocation8 + $0x68] sm:$0xff]
    %v848 = vld [vmem:[#allocation8 + $0x70] sm:$0xff]
    %v849 = vld [vmem:[#allocation8 + $0x78] sm:$0xff]
    %v850 = vld [vmem:[#allocation8 + $0x80] sm:$0xff]
    %v851 = vld [vmem:[#allocation8 + $0x88] sm:$0xff]
    %v852 = vld [vmem:[#allocation8 + $0x90] sm:$0xff]
    %v853 = vld [vmem:[#allocation8 + $0x98] sm:$0xff]
    %v854 = vld [vmem:[#allocation8 + $0xa0] sm:$0xff]
    %v855 = vld [vmem:[#allocation8 + $0xa8] sm:$0xff]
    %v856 = vld [vmem:[#allocation8 + $0xb0] sm:$0xff]
    %v857 = vld [vmem:[#allocation8 + $0xb8] sm:$0xff]
    %v858 = vld [vmem:[#allocation8 + $0xc0] sm:$0xff]
    %v859 = vld [vmem:[#allocation8 + $0xc8] sm:$0xff]
    %v860 = vld [vmem:[#allocation8 + $0xd0] sm:$0xff]
    %v861 = vld [vmem:[#allocation8 + $0xd8] sm:$0xff]
    %v862 = vld [vmem:[#allocation8 + $0xe0] sm:$0xff]
    %v863 = vld [vmem:[#allocation8 + $0xe8] sm:$0xff]
    %v864 = vld [vmem:[#allocation8 + $0xf0] sm:$0xff]
    %v865 = vld [vmem:[#allocation8 + $0xf8] sm:$0xff]
    %v866 = vld [vmem:[#allocation8 + $0x100] sm:$0xff]
    %v867 = vld [vmem:[#allocation8 + $0x108] sm:$0xff]
    %v868 = vld [vmem:[#allocation8 + $0x110] sm:$0xff]
    %v869 = vld [vmem:[#allocation8 + $0x118] sm:$0xff]
    %v870 = vld [vmem:[#allocation8 + $0x120] sm:$0xff]
    %v871 = vld [vmem:[#allocation8 + $0x128] sm:$0xff]
    %v872 = vld [vmem:[#allocation8 + $0x130] sm:$0xff]
    %v873 = vld [vmem:[#allocation8 + $0x138] sm:$0xff]
    %v874 = vld [vmem:[#allocation8 + $0x140] sm:$0xff]
    %v875 = vld [vmem:[#allocation8 + $0x148] sm:$0xff]
    %v876 = vld [vmem:[#allocation8 + $0x150] sm:$0xff]
    %v877 = vld [vmem:[#allocation8 + $0x158] sm:$0xff]
    %v878 = vld [vmem:[#allocation8 + $0x160] sm:$0xff]
    %v879 = vld [vmem:[#allocation8 + $0x168] sm:$0xff]
    %v880 = vld [vmem:[#allocation8 + $0x170] sm:$0xff]
    %v881 = vld [vmem:[#allocation8 + $0x178] sm:$0xff]
    %882 = vmatprep.subr.mxu0 %v835
    %883 = vmatpush1.msra.mxu0 %v834
    %884 = vmatprep.subr.mxu0 %v838
    %885 = vmatpush1.msra.mxu0 %v837
    %886 = vmatprep.subr.mxu0 %v841
    %887 = vmatpush1.msra.mxu0 %v840
    %888 = vmatprep.subr.mxu0 %v844
    %889 = vmatpush1.msra.mxu0 %v843
    %890 = vmatprep.subr.mxu0 %v847
    %891 = vmatpush1.msra.mxu0 %v846
    %892 = vmatprep.subr.mxu0 %v850
    %893 = vmatpush1.msra.mxu0 %v849
    %894 = vmatprep.subr.mxu0 %v853
    %895 = vmatpush1.msra.mxu0 %v852
    %896 = vmatprep.subr.mxu0 %v856
    %897 = vmatpush1.msra.mxu0 %v855
    %898 = vmatprep.subr.mxu0 %v859
    %899 = vmatpush1.msra.mxu0 %v858
    %900 = vmatprep.subr.mxu0 %v862
    %901 = vmatpush1.msra.mxu0 %v861
    %902 = vmatprep.subr.mxu0 %v865
    %903 = vmatpush1.msra.mxu0 %v864
    %904 = vmatprep.subr.mxu0 %v868
    %905 = vmatpush1.msra.mxu0 %v867
    %906 = vmatprep.subr.mxu0 %v871
    %907 = vmatpush1.msra.mxu0 %v870
    %908 = vmatprep.subr.mxu0 %v874
    %909 = vmatpush1.msra.mxu0 %v873
    %910 = vmatprep.subr.mxu0 %v877
    %911 = vmatpush1.msra.mxu0 %v876
    %912 = vmatprep.subr.mxu0 %v880
    %913 = vmatpush1.msra.mxu0 %v879
    %914 = vmatprep.subr.mxu0 0.0
    %915 = vmatpush1.msra.mxu0 0.0
    %916 = vmatprep.subr.mxu0 0.0
    %917 = vmatpush1.msra.mxu0 0.0
    %918 = vmatprep.subr.mxu0 0.0
    %919 = vmatpush1.msra.mxu0 0.0
    %920 = vmatprep.subr.mxu0 0.0
    %921 = vmatpush1.msra.mxu0 0.0
    %922 = vmatprep.subr.mxu0 0.0
    %923 = vmatpush1.msra.mxu0 0.0
    %924 = vmatprep.subr.mxu0 0.0
    %925 = vmatpush1.msra.mxu0 0.0
    %926 = vmatprep.subr.mxu0 0.0
    %927 = vmatpush1.msra.mxu0 0.0
    %928 = vmatprep.subr.mxu0 0.0
    %929 = vmatpush1.msra.mxu0 0.0
    %930 = vmatprep.subr.mxu0 0.0
    %931 = vmatpush1.msra.mxu0 0.0
    %932 = vmatprep.subr.mxu0 0.0
    %933 = vmatpush1.msra.mxu0 0.0
    %934 = vmatprep.subr.mxu0 0.0
    %935 = vmatpush1.msra.mxu0 0.0
    %936 = vmatprep.subr.mxu0 0.0
    %937 = vmatpush1.msra.mxu0 0.0
    %938 = vmatprep.subr.mxu0 0.0
    %939 = vmatpush1.msra.mxu0 0.0
    %940 = vmatprep.subr.mxu0 0.0
    %941 = vmatpush1.msra.mxu0 0.0
    %942 = vmatprep.subr.mxu0 0.0
    %943 = vmatpush1.msra.mxu0 0.0
    %944 = vmatprep.subr.mxu0 0.0
    %945 = vmatpush1.msra.mxu0 0.0
    %946 = vmatprep.mubr.f32.mxu0 0.0
    %947 = vmatmul.mubr.f32.gmra.mrb[0].mxu0 %v829
    %v948 = vpop.f32.mrb[0].mxu0
    %v949 = vadd.f32 0.0, %v948
    %v950 = vpop.f32.mrb[0].mxu0
    %v951 = vadd.f32 0.0, %v950
    %952 = vdwg.mxu0
    %953 = vmatprep.subr.mxu0 0.0
    %954 = vmatpush1.msra.mxu0 %v836
    %955 = vmatprep.subr.mxu0 0.0
    %956 = vmatpush1.msra.mxu0 %v839
    %957 = vmatprep.subr.mxu0 0.0
    %958 = vmatpush1.msra.mxu0 %v842
    %959 = vmatprep.subr.mxu0 0.0
    %960 = vmatpush1.msra.mxu0 %v845
    %961 = vmatprep.subr.mxu0 0.0
    %962 = vmatpush1.msra.mxu0 %v848
    %963 = vmatprep.subr.mxu0 0.0
    %964 = vmatpush1.msra.mxu0 %v851
    %965 = vmatprep.subr.mxu0 0.0
    %966 = vmatpush1.msra.mxu0 %v854
    %967 = vmatprep.subr.mxu0 0.0
    %968 = vmatpush1.msra.mxu0 %v857
    %969 = vmatprep.subr.mxu0 0.0
    %970 = vmatpush1.msra.mxu0 %v860
    %971 = vmatprep.subr.mxu0 0.0
    %972 = vmatpush1.msra.mxu0 %v863
    %973 = vmatprep.subr.mxu0 0.0
    %974 = vmatpush1.msra.mxu0 %v866
    %975 = vmatprep.subr.mxu0 0.0
    %976 = vmatpush1.msra.mxu0 %v869
    %977 = vmatprep.subr.mxu0 0.0
    %978 = vmatpush1.msra.mxu0 %v872
    %979 = vmatprep.subr.mxu0 0.0
    %980 = vmatpush1.msra.mxu0 %v875
    %981 = vmatprep.subr.mxu0 0.0
    %982 = vmatpush1.msra.mxu0 %v878
    %983 = vmatprep.subr.mxu0 0.0
    %984 = vmatpush1.msra.mxu0 %v881
    %985 = vmatprep.subr.mxu0 0.0
    %986 = vmatpush1.msra.mxu0 0.0
    %987 = vmatprep.subr.mxu0 0.0
    %988 = vmatpush1.msra.mxu0 0.0
    %989 = vmatprep.subr.mxu0 0.0
    %990 = vmatpush1.msra.mxu0 0.0
    %991 = vmatprep.subr.mxu0 0.0
    %992 = vmatpush1.msra.mxu0 0.0
    %993 = vmatprep.subr.mxu0 0.0
    %994 = vmatpush1.msra.mxu0 0.0
    %995 = vmatprep.subr.mxu0 0.0
    %996 = vmatpush1.msra.mxu0 0.0
    %997 = vmatprep.subr.mxu0 0.0
    %998 = vmatpush1.msra.mxu0 0.0
    %999 = vmatprep.subr.mxu0 0.0
    %1000 = vmatpush1.msra.mxu0 0.0
    %1001 = vmatprep.subr.mxu0 0.0
    %1002 = vmatpush1.msra.mxu0 0.0
    %1003 = vmatprep.subr.mxu0 0.0
    %1004 = vmatpush1.msra.mxu0 0.0
    %1005 = vmatprep.subr.mxu0 0.0
    %1006 = vmatpush1.msra.mxu0 0.0
    %1007 = vmatprep.subr.mxu0 0.0
    %1008 = vmatpush1.msra.mxu0 0.0
    %1009 = vmatprep.subr.mxu0 0.0
    %1010 = vmatpush1.msra.mxu0 0.0
    %1011 = vmatprep.subr.mxu0 0.0
    %1012 = vmatpush1.msra.mxu0 0.0
    %1013 = vmatprep.subr.mxu0 0.0
    %1014 = vmatpush1.msra.mxu0 0.0
    %1015 = vmatprep.subr.mxu0 0.0
    %1016 = vmatpush1.msra.mxu0 0.0
    %1017 = vmatprep.mubr.f32.mxu0 0.0
    %1018 = vmatmul.mubr.f32.gmra.mrb[0].mxu0 %v829
    %v1019 = vpop.f32.mrb[0].mxu0
    %v1020 = vadd.f32 0.0, %v1019
    %v1021 = vpop.f32.mrb[0].mxu0
    %1022 = vdwg.mxu0
    %v1023 = vadd.f32 %v833, %v949
    %v1024 = vxor.u32 %v1023, 2147483648
    %v1025 = vmul.f32 %v1024, 1.442695
    %v1026 = vpow.pop %v1025
    %v1027 = vadd.f32 %v1026, 1.0
    %v1028 = vrcp.pop %v1027
    %v1029 = vmul.f32 1.0, %v1028
    %v1031 = vrot.slane %v833, 2
    %v1033 = vadd.f32 %v1031, %v951
    %v1034 = vxor.u32 %v1033, 2147483648
    %v1035 = vmul.f32 %v1034, 1.442695
    %v1036 = vpow.pop %v1035
    %v1037 = vadd.f32 %v1036, 1.0
    %v1038 = vrcp.pop %v1037
    %v1039 = vmul.f32 1.0, %v1038
    %v1040 = vadd.f32 %v1020, %v392
    %v1041 = vmul.f32 %v1029, %v1040
    %v1042 = vrot.slane %v833, 4
    %v1044 = vadd.f32 %v1042, %v1041
    %v1045 = vtanh.pop %v1044
    %v1046 = vsub.f32 1.0, %v1039
    %v1047 = vmul.f32 %v1046, %v1045
    %v1048 = vmul.f32 %v1039, %v829
    %v1049 = vadd.f32 %v1047, %v1048
    %s1050 = scalar_lea.vmem [#allocation9], 4
    %1051 = vst [vmem:[%s1050] sm:$0x3] %v1049
    %s1052 = scalar_lea.vmem [#allocation2], 18
    %v1053 = vld [vmem:[%s1052] sm:$0x3f]
    %v1054 = vld [vmem:[#allocation8] sm:$0xff]
    %v1055 = vld [vmem:[#allocation8 + $0x8] sm:$0xff]
    %v1056 = vld [vmem:[#allocation8 + $0x10] sm:$0xff]
    %v1057 = vld [vmem:[#allocation8 + $0x18] sm:$0xff]
    %v1058 = vld [vmem:[#allocation8 + $0x20] sm:$0xff]
    %v1059 = vld [vmem:[#allocation8 + $0x28] sm:$0xff]
    %v1060 = vld [vmem:[#allocation8 + $0x30] sm:$0xff]
    %v1061 = vld [vmem:[#allocation8 + $0x38] sm:$0xff]
    %v1062 = vld [vmem:[#allocation8 + $0x40] sm:$0xff]
    %v1063 = vld [vmem:[#allocation8 + $0x48] sm:$0xff]
    %v1064 = vld [vmem:[#allocation8 + $0x50] sm:$0xff]
    %v1065 = vld [vmem:[#allocation8 + $0x58] sm:$0xff]
    %v1066 = vld [vmem:[#allocation8 + $0x60] sm:$0xff]
    %v1067 = vld [vmem:[#allocation8 + $0x68] sm:$0xff]
    %v1068 = vld [vmem:[#allocation8 + $0x70] sm:$0xff]
    %v1069 = vld [vmem:[#allocation8 + $0x78] sm:$0xff]
    %v1070 = vld [vmem:[#allocation8 + $0x80] sm:$0xff]
    %v1071 = vld [vmem:[#allocation8 + $0x88] sm:$0xff]
    %v1072 = vld [vmem:[#allocation8 + $0x90] sm:$0xff]
    %v1073 = vld [vmem:[#allocation8 + $0x98] sm:$0xff]
    %v1074 = vld [vmem:[#allocation8 + $0xa0] sm:$0xff]
    %v1075 = vld [vmem:[#allocation8 + $0xa8] sm:$0xff]
    %v1076 = vld [vmem:[#allocation8 + $0xb0] sm:$0xff]
    %v1077 = vld [vmem:[#allocation8 + $0xb8] sm:$0xff]
    %v1078 = vld [vmem:[#allocation8 + $0xc0] sm:$0xff]
    %v1079 = vld [vmem:[#allocation8 + $0xc8] sm:$0xff]
    %v1080 = vld [vmem:[#allocation8 + $0xd0] sm:$0xff]
    %v1081 = vld [vmem:[#allocation8 + $0xd8] sm:$0xff]
    %v1082 = vld [vmem:[#allocation8 + $0xe0] sm:$0xff]
    %v1083 = vld [vmem:[#allocation8 + $0xe8] sm:$0xff]
    %v1084 = vld [vmem:[#allocation8 + $0xf0] sm:$0xff]
    %v1085 = vld [vmem:[#allocation8 + $0xf8] sm:$0xff]
    %v1086 = vld [vmem:[#allocation8 + $0x100] sm:$0xff]
    %v1087 = vld [vmem:[#allocation8 + $0x108] sm:$0xff]
    %v1088 = vld [vmem:[#allocation8 + $0x110] sm:$0xff]
    %v1089 = vld [vmem:[#allocation8 + $0x118] sm:$0xff]
    %v1090 = vld [vmem:[#allocation8 + $0x120] sm:$0xff]
    %v1091 = vld [vmem:[#allocation8 + $0x128] sm:$0xff]
    %v1092 = vld [vmem:[#allocation8 + $0x130] sm:$0xff]
    %v1093 = vld [vmem:[#allocation8 + $0x138] sm:$0xff]
    %v1094 = vld [vmem:[#allocation8 + $0x140] sm:$0xff]
    %v1095 = vld [vmem:[#allocation8 + $0x148] sm:$0xff]
    %v1096 = vld [vmem:[#allocation8 + $0x150] sm:$0xff]
    %v1097 = vld [vmem:[#allocation8 + $0x158] sm:$0xff]
    %v1098 = vld [vmem:[#allocation8 + $0x160] sm:$0xff]
    %v1099 = vld [vmem:[#allocation8 + $0x168] sm:$0xff]
    %v1100 = vld [vmem:[#allocation8 + $0x170] sm:$0xff]
    %v1101 = vld [vmem:[#allocation8 + $0x178] sm:$0xff]
    %1102 = vmatprep.subr.mxu0 %v1055
    %1103 = vmatpush1.msra.mxu0 %v1054
    %1104 = vmatprep.subr.mxu0 %v1058
    %1105 = vmatpush1.msra.mxu0 %v1057
    %1106 = vmatprep.subr.mxu0 %v1061
    %1107 = vmatpush1.msra.mxu0 %v1060
    %1108 = vmatprep.subr.mxu0 %v1064
    %1109 = vmatpush1.msra.mxu0 %v1063
    %1110 = vmatprep.subr.mxu0 %v1067
    %1111 = vmatpush1.msra.mxu0 %v1066
    %1112 = vmatprep.subr.mxu0 %v1070
    %1113 = vmatpush1.msra.mxu0 %v1069
    %1114 = vmatprep.subr.mxu0 %v1073
    %1115 = vmatpush1.msra.mxu0 %v1072
    %1116 = vmatprep.subr.mxu0 %v1076
    %1117 = vmatpush1.msra.mxu0 %v1075
    %1118 = vmatprep.subr.mxu0 %v1079
    %1119 = vmatpush1.msra.mxu0 %v1078
    %1120 = vmatprep.subr.mxu0 %v1082
    %1121 = vmatpush1.msra.mxu0 %v1081
    %1122 = vmatprep.subr.mxu0 %v1085
    %1123 = vmatpush1.msra.mxu0 %v1084
    %1124 = vmatprep.subr.mxu0 %v1088
    %1125 = vmatpush1.msra.mxu0 %v1087
    %1126 = vmatprep.subr.mxu0 %v1091
    %1127 = vmatpush1.msra.mxu0 %v1090
    %1128 = vmatprep.subr.mxu0 %v1094
    %1129 = vmatpush1.msra.mxu0 %v1093
    %1130 = vmatprep.subr.mxu0 %v1097
    %1131 = vmatpush1.msra.mxu0 %v1096
    %1132 = vmatprep.subr.mxu0 %v1100
    %1133 = vmatpush1.msra.mxu0 %v1099
    %1134 = vmatprep.subr.mxu0 0.0
    %1135 = vmatpush1.msra.mxu0 0.0
    %1136 = vmatprep.subr.mxu0 0.0
    %1137 = vmatpush1.msra.mxu0 0.0
    %1138 = vmatprep.subr.mxu0 0.0
    %1139 = vmatpush1.msra.mxu0 0.0
    %1140 = vmatprep.subr.mxu0 0.0
    %1141 = vmatpush1.msra.mxu0 0.0
    %1142 = vmatprep.subr.mxu0 0.0
    %1143 = vmatpush1.msra.mxu0 0.0
    %1144 = vmatprep.subr.mxu0 0.0
    %1145 = vmatpush1.msra.mxu0 0.0
    %1146 = vmatprep.subr.mxu0 0.0
    %1147 = vmatpush1.msra.mxu0 0.0
    %1148 = vmatprep.subr.mxu0 0.0
    %1149 = vmatpush1.msra.mxu0 0.0
    %1150 = vmatprep.subr.mxu0 0.0
    %1151 = vmatpush1.msra.mxu0 0.0
    %1152 = vmatprep.subr.mxu0 0.0
    %1153 = vmatpush1.msra.mxu0 0.0
    %1154 = vmatprep.subr.mxu0 0.0
    %1155 = vmatpush1.msra.mxu0 0.0
    %1156 = vmatprep.subr.mxu0 0.0
    %1157 = vmatpush1.msra.mxu0 0.0
    %1158 = vmatprep.subr.mxu0 0.0
    %1159 = vmatpush1.msra.mxu0 0.0
    %1160 = vmatprep.subr.mxu0 0.0
    %1161 = vmatpush1.msra.mxu0 0.0
    %1162 = vmatprep.subr.mxu0 0.0
    %1163 = vmatpush1.msra.mxu0 0.0
    %1164 = vmatprep.subr.mxu0 0.0
    %1165 = vmatpush1.msra.mxu0 0.0
    %1166 = vmatprep.mubr.f32.mxu0 0.0
    %1167 = vmatmul.mubr.f32.gmra.mrb[0].mxu0 %v1049
    %v1168 = vpop.f32.mrb[0].mxu0
    %v1169 = vadd.f32 0.0, %v1168
    %v1170 = vpop.f32.mrb[0].mxu0
    %v1171 = vadd.f32 0.0, %v1170
    %1172 = vdwg.mxu0
    %1173 = vmatprep.subr.mxu0 0.0
    %1174 = vmatpush1.msra.mxu0 %v1056
    %1175 = vmatprep.subr.mxu0 0.0
    %1176 = vmatpush1.msra.mxu0 %v1059
    %1177 = vmatprep.subr.mxu0 0.0
    %1178 = vmatpush1.msra.mxu0 %v1062
    %1179 = vmatprep.subr.mxu0 0.0
    %1180 = vmatpush1.msra.mxu0 %v1065
    %1181 = vmatprep.subr.mxu0 0.0
    %1182 = vmatpush1.msra.mxu0 %v1068
    %1183 = vmatprep.subr.mxu0 0.0
    %1184 = vmatpush1.msra.mxu0 %v1071
    %1185 = vmatprep.subr.mxu0 0.0
    %1186 = vmatpush1.msra.mxu0 %v1074
    %1187 = vmatprep.subr.mxu0 0.0
    %1188 = vmatpush1.msra.mxu0 %v1077
    %1189 = vmatprep.subr.mxu0 0.0
    %1190 = vmatpush1.msra.mxu0 %v1080
    %1191 = vmatprep.subr.mxu0 0.0
    %1192 = vmatpush1.msra.mxu0 %v1083
    %1193 = vmatprep.subr.mxu0 0.0
    %1194 = vmatpush1.msra.mxu0 %v1086
    %1195 = vmatprep.subr.mxu0 0.0
    %1196 = vmatpush1.msra.mxu0 %v1089
    %1197 = vmatprep.subr.mxu0 0.0
    %1198 = vmatpush1.msra.mxu0 %v1092
    %1199 = vmatprep.subr.mxu0 0.0
    %1200 = vmatpush1.msra.mxu0 %v1095
    %1201 = vmatprep.subr.mxu0 0.0
    %1202 = vmatpush1.msra.mxu0 %v1098
    %1203 = vmatprep.subr.mxu0 0.0
    %1204 = vmatpush1.msra.mxu0 %v1101
    %1205 = vmatprep.subr.mxu0 0.0
    %1206 = vmatpush1.msra.mxu0 0.0
    %1207 = vmatprep.subr.mxu0 0.0
    %1208 = vmatpush1.msra.mxu0 0.0
    %1209 = vmatprep.subr.mxu0 0.0
    %1210 = vmatpush1.msra.mxu0 0.0
    %1211 = vmatprep.subr.mxu0 0.0
    %1212 = vmatpush1.msra.mxu0 0.0
    %1213 = vmatprep.subr.mxu0 0.0
    %1214 = vmatpush1.msra.mxu0 0.0
    %1215 = vmatprep.subr.mxu0 0.0
    %1216 = vmatpush1.msra.mxu0 0.0
    %1217 = vmatprep.subr.mxu0 0.0
    %1218 = vmatpush1.msra.mxu0 0.0
    %1219 = vmatprep.subr.mxu0 0.0
    %1220 = vmatpush1.msra.mxu0 0.0
    %1221 = vmatprep.subr.mxu0 0.0
    %1222 = vmatpush1.msra.mxu0 0.0
    %1223 = vmatprep.subr.mxu0 0.0
    %1224 = vmatpush1.msra.mxu0 0.0
    %1225 = vmatprep.subr.mxu0 0.0
    %1226 = vmatpush1.msra.mxu0 0.0
    %1227 = vmatprep.subr.mxu0 0.0
    %1228 = vmatpush1.msra.mxu0 0.0
    %1229 = vmatprep.subr.mxu0 0.0
    %1230 = vmatpush1.msra.mxu0 0.0
    %1231 = vmatprep.subr.mxu0 0.0
    %1232 = vmatpush1.msra.mxu0 0.0
    %1233 = vmatprep.subr.mxu0 0.0
    %1234 = vmatpush1.msra.mxu0 0.0
    %1235 = vmatprep.subr.mxu0 0.0
    %1236 = vmatpush1.msra.mxu0 0.0
    %1237 = vmatprep.mubr.f32.mxu0 0.0
    %1238 = vmatmul.mubr.f32.gmra.mrb[0].mxu0 %v1049
    %v1239 = vpop.f32.mrb[0].mxu0
    %v1240 = vadd.f32 0.0, %v1239
    %v1241 = vpop.f32.mrb[0].mxu0
    %1242 = vdwg.mxu0
    %v1243 = vadd.f32 %v1053, %v1169
    %v1244 = vxor.u32 %v1243, 2147483648
    %v1245 = vmul.f32 %v1244, 1.442695
    %v1246 = vpow.pop %v1245
    %v1247 = vadd.f32 %v1246, 1.0
    %v1248 = vrcp.pop %v1247
    %v1249 = vmul.f32 1.0, %v1248
    %v1251 = vrot.slane %v1053, 2
    %v1253 = vadd.f32 %v1251, %v1171
    %v1254 = vxor.u32 %v1253, 2147483648
    %v1255 = vmul.f32 %v1254, 1.442695
    %v1256 = vpow.pop %v1255
    %v1257 = vadd.f32 %v1256, 1.0
    %v1258 = vrcp.pop %v1257
    %v1259 = vmul.f32 1.0, %v1258
    %v1260 = vadd.f32 %v1240, %v392
    %v1261 = vmul.f32 %v1249, %v1260
    %v1262 = vrot.slane %v1053, 4
    %v1264 = vadd.f32 %v1262, %v1261
    %v1265 = vtanh.pop %v1264
    %v1266 = vsub.f32 1.0, %v1259
    %v1267 = vmul.f32 %v1266, %v1265
    %v1268 = vmul.f32 %v1259, %v1049
    %v1269 = vadd.f32 %v1267, %v1268
    %s1270 = scalar_lea.vmem [#allocation9], 6
    %1271 = vst [vmem:[%s1270] sm:$0x3] %v1269
    %s1272 = scalar_lea.vmem [#allocation2], 24
    %v1273 = vld [vmem:[%s1272] sm:$0x3f]
    %v1274 = vld [vmem:[#allocation8] sm:$0xff]
    %v1275 = vld [vmem:[#allocation8 + $0x8] sm:$0xff]
    %v1276 = vld [vmem:[#allocation8 + $0x10] sm:$0xff]
    %v1277 = vld [vmem:[#allocation8 + $0x18] sm:$0xff]
    %v1278 = vld [vmem:[#allocation8 + $0x20] sm:$0xff]
    %v1279 = vld [vmem:[#allocation8 + $0x28] sm:$0xff]
    %v1280 = vld [vmem:[#allocation8 + $0x30] sm:$0xff]
    %v1281 = vld [vmem:[#allocation8 + $0x38] sm:$0xff]
    %v1282 = vld [vmem:[#allocation8 + $0x40] sm:$0xff]
    %v1283 = vld [vmem:[#allocation8 + $0x48] sm:$0xff]
    %v1284 = vld [vmem:[#allocation8 + $0x50] sm:$0xff]
    %v1285 = vld [vmem:[#allocation8 + $0x58] sm:$0xff]
    %v1286 = vld [vmem:[#allocation8 + $0x60] sm:$0xff]
    %v1287 = vld [vmem:[#allocation8 + $0x68] sm:$0xff]
    %v1288 = vld [vmem:[#allocation8 + $0x70] sm:$0xff]
    %v1289 = vld [vmem:[#allocation8 + $0x78] sm:$0xff]
    %v1290 = vld [vmem:[#allocation8 + $0x80] sm:$0xff]
    %v1291 = vld [vmem:[#allocation8 + $0x88] sm:$0xff]
    %v1292 = vld [vmem:[#allocation8 + $0x90] sm:$0xff]
    %v1293 = vld [vmem:[#allocation8 + $0x98] sm:$0xff]
    %v1294 = vld [vmem:[#allocation8 + $0xa0] sm:$0xff]
    %v1295 = vld [vmem:[#allocation8 + $0xa8] sm:$0xff]
    %v1296 = vld [vmem:[#allocation8 + $0xb0] sm:$0xff]
    %v1297 = vld [vmem:[#allocation8 + $0xb8] sm:$0xff]
    %v1298 = vld [vmem:[#allocation8 + $0xc0] sm:$0xff]
    %v1299 = vld [vmem:[#allocation8 + $0xc8] sm:$0xff]
    %v1300 = vld [vmem:[#allocation8 + $0xd0] sm:$0xff]
    %v1301 = vld [vmem:[#allocation8 + $0xd8] sm:$0xff]
    %v1302 = vld [vmem:[#allocation8 + $0xe0] sm:$0xff]
    %v1303 = vld [vmem:[#allocation8 + $0xe8] sm:$0xff]
    %v1304 = vld [vmem:[#allocation8 + $0xf0] sm:$0xff]
    %v1305 = vld [vmem:[#allocation8 + $0xf8] sm:$0xff]
    %v1306 = vld [vmem:[#allocation8 + $0x100] sm:$0xff]
    %v1307 = vld [vmem:[#allocation8 + $0x108] sm:$0xff]
    %v1308 = vld [vmem:[#allocation8 + $0x110] sm:$0xff]
    %v1309 = vld [vmem:[#allocation8 + $0x118] sm:$0xff]
    %v1310 = vld [vmem:[#allocation8 + $0x120] sm:$0xff]
    %v1311 = vld [vmem:[#allocation8 + $0x128] sm:$0xff]
    %v1312 = vld [vmem:[#allocation8 + $0x130] sm:$0xff]
    %v1313 = vld [vmem:[#allocation8 + $0x138] sm:$0xff]
    %v1314 = vld [vmem:[#allocation8 + $0x140] sm:$0xff]
    %v1315 = vld [vmem:[#allocation8 + $0x148] sm:$0xff]
    %v1316 = vld [vmem:[#allocation8 + $0x150] sm:$0xff]
    %v1317 = vld [vmem:[#allocation8 + $0x158] sm:$0xff]
    %v1318 = vld [vmem:[#allocation8 + $0x160] sm:$0xff]
    %v1319 = vld [vmem:[#allocation8 + $0x168] sm:$0xff]
    %v1320 = vld [vmem:[#allocation8 + $0x170] sm:$0xff]
    %v1321 = vld [vmem:[#allocation8 + $0x178] sm:$0xff]
    %1322 = vmatprep.subr.mxu0 %v1275
    %1323 = vmatpush1.msra.mxu0 %v1274
    %1324 = vmatprep.subr.mxu0 %v1278
    %1325 = vmatpush1.msra.mxu0 %v1277
    %1326 = vmatprep.subr.mxu0 %v1281
    %1327 = vmatpush1.msra.mxu0 %v1280
    %1328 = vmatprep.subr.mxu0 %v1284
    %1329 = vmatpush1.msra.mxu0 %v1283
    %1330 = vmatprep.subr.mxu0 %v1287
    %1331 = vmatpush1.msra.mxu0 %v1286
    %1332 = vmatprep.subr.mxu0 %v1290
    %1333 = vmatpush1.msra.mxu0 %v1289
    %1334 = vmatprep.subr.mxu0 %v1293
    %1335 = vmatpush1.msra.mxu0 %v1292
    %1336 = vmatprep.subr.mxu0 %v1296
    %1337 = vmatpush1.msra.mxu0 %v1295
    %1338 = vmatprep.subr.mxu0 %v1299
    %1339 = vmatpush1.msra.mxu0 %v1298
    %1340 = vmatprep.subr.mxu0 %v1302
    %1341 = vmatpush1.msra.mxu0 %v1301
    %1342 = vmatprep.subr.mxu0 %v1305
    %1343 = vmatpush1.msra.mxu0 %v1304
    %1344 = vmatprep.subr.mxu0 %v1308
    %1345 = vmatpush1.msra.mxu0 %v1307
    %1346 = vmatprep.subr.mxu0 %v1311
    %1347 = vmatpush1.msra.mxu0 %v1310
    %1348 = vmatprep.subr.mxu0 %v1314
    %1349 = vmatpush1.msra.mxu0 %v1313
    %1350 = vmatprep.subr.mxu0 %v1317
    %1351 = vmatpush1.msra.mxu0 %v1316
    %1352 = vmatprep.subr.mxu0 %v1320
    %1353 = vmatpush1.msra.mxu0 %v1319
    %1354 = vmatprep.subr.mxu0 0.0
    %1355 = vmatpush1.msra.mxu0 0.0
    %1356 = vmatprep.subr.mxu0 0.0
    %1357 = vmatpush1.msra.mxu0 0.0
    %1358 = vmatprep.subr.mxu0 0.0
    %1359 = vmatpush1.msra.mxu0 0.0
    %1360 = vmatprep.subr.mxu0 0.0
    %1361 = vmatpush1.msra.mxu0 0.0
    %1362 = vmatprep.subr.mxu0 0.0
    %1363 = vmatpush1.msra.mxu0 0.0
    %1364 = vmatprep.subr.mxu0 0.0
    %1365 = vmatpush1.msra.mxu0 0.0
    %1366 = vmatprep.subr.mxu0 0.0
    %1367 = vmatpush1.msra.mxu0 0.0
    %1368 = vmatprep.subr.mxu0 0.0
    %1369 = vmatpush1.msra.mxu0 0.0
    %1370 = vmatprep.subr.mxu0 0.0
    %1371 = vmatpush1.msra.mxu0 0.0
    %1372 = vmatprep.subr.mxu0 0.0
    %1373 = vmatpush1.msra.mxu0 0.0
    %1374 = vmatprep.subr.mxu0 0.0
    %1375 = vmatpush1.msra.mxu0 0.0
    %1376 = vmatprep.subr.mxu0 0.0
    %1377 = vmatpush1.msra.mxu0 0.0
    %1378 = vmatprep.subr.mxu0 0.0
    %1379 = vmatpush1.msra.mxu0 0.0
    %1380 = vmatprep.subr.mxu0 0.0
    %1381 = vmatpush1.msra.mxu0 0.0
    %1382 = vmatprep.subr.mxu0 0.0
    %1383 = vmatpush1.msra.mxu0 0.0
    %1384 = vmatprep.subr.mxu0 0.0
    %1385 = vmatpush1.msra.mxu0 0.0
    %1386 = vmatprep.mubr.f32.mxu0 0.0
    %1387 = vmatmul.mubr.f32.gmra.mrb[0].mxu0 %v1269
    %v1388 = vpop.f32.mrb[0].mxu0
    %v1389 = vadd.f32 0.0, %v1388
    %v1390 = vpop.f32.mrb[0].mxu0
    %v1391 = vadd.f32 0.0, %v1390
    %1392 = vdwg.mxu0
    %1393 = vmatprep.subr.mxu0 0.0
    %1394 = vmatpush1.msra.mxu0 %v1276
    %1395 = vmatprep.subr.mxu0 0.0
    %1396 = vmatpush1.msra.mxu0 %v1279
    %1397 = vmatprep.subr.mxu0 0.0
    %1398 = vmatpush1.msra.mxu0 %v1282
    %1399 = vmatprep.subr.mxu0 0.0
    %1400 = vmatpush1.msra.mxu0 %v1285
    %1401 = vmatprep.subr.mxu0 0.0
    %1402 = vmatpush1.msra.mxu0 %v1288
    %1403 = vmatprep.subr.mxu0 0.0
    %1404 = vmatpush1.msra.mxu0 %v1291
    %1405 = vmatprep.subr.mxu0 0.0
    %1406 = vmatpush1.msra.mxu0 %v1294
    %1407 = vmatprep.subr.mxu0 0.0
    %1408 = vmatpush1.msra.mxu0 %v1297
    %1409 = vmatprep.subr.mxu0 0.0
    %1410 = vmatpush1.msra.mxu0 %v1300
    %1411 = vmatprep.subr.mxu0 0.0
    %1412 = vmatpush1.msra.mxu0 %v1303
    %1413 = vmatprep.subr.mxu0 0.0
    %1414 = vmatpush1.msra.mxu0 %v1306
    %1415 = vmatprep.subr.mxu0 0.0
    %1416 = vmatpush1.msra.mxu0 %v1309
    %1417 = vmatprep.subr.mxu0 0.0
    %1418 = vmatpush1.msra.mxu0 %v1312
    %1419 = vmatprep.subr.mxu0 0.0
    %1420 = vmatpush1.msra.mxu0 %v1315
    %1421 = vmatprep.subr.mxu0 0.0
    %1422 = vmatpush1.msra.mxu0 %v1318
    %1423 = vmatprep.subr.mxu0 0.0
    %1424 = vmatpush1.msra.mxu0 %v1321
    %1425 = vmatprep.subr.mxu0 0.0
    %1426 = vmatpush1.msra.mxu0 0.0
    %1427 = vmatprep.subr.mxu0 0.0
    %1428 = vmatpush1.msra.mxu0 0.0
    %1429 = vmatprep.subr.mxu0 0.0
    %1430 = vmatpush1.msra.mxu0 0.0
    %1431 = vmatprep.subr.mxu0 0.0
    %1432 = vmatpush1.msra.mxu0 0.0
    %1433 = vmatprep.subr.mxu0 0.0
    %1434 = vmatpush1.msra.mxu0 0.0
    %1435 = vmatprep.subr.mxu0 0.0
    %1436 = vmatpush1.msra.mxu0 0.0
    %1437 = vmatprep.subr.mxu0 0.0
    %1438 = vmatpush1.msra.mxu0 0.0
    %1439 = vmatprep.subr.mxu0 0.0
    %1440 = vmatpush1.msra.mxu0 0.0
    %1441 = vmatprep.subr.mxu0 0.0
    %1442 = vmatpush1.msra.mxu0 0.0
    %1443 = vmatprep.subr.mxu0 0.0
    %1444 = vmatpush1.msra.mxu0 0.0
    %1445 = vmatprep.subr.mxu0 0.0
    %1446 = vmatpush1.msra.mxu0 0.0
    %1447 = vmatprep.subr.mxu0 0.0
    %1448 = vmatpush1.msra.mxu0 0.0
    %1449 = vmatprep.subr.mxu0 0.0
    %1450 = vmatpush1.msra.mxu0 0.0
    %1451 = vmatprep.subr.mxu0 0.0
    %1452 = vmatpush1.msra.mxu0 0.0
    %1453 = vmatprep.subr.mxu0 0.0
    %1454 = vmatpush1.msra.mxu0 0.0
    %1455 = vmatprep.subr.mxu0 0.0
    %1456 = vmatpush1.msra.mxu0 0.0
    %1457 = vmatprep.mubr.f32.mxu0 0.0
    %1458 = vmatmul.mubr.f32.gmra.mrb[0].mxu0 %v1269
    %v1459 = vpop.f32.mrb[0].mxu0
    %v1460 = vadd.f32 0.0, %v1459
    %v1461 = vpop.f32.mrb[0].mxu0
    %1462 = vdwg.mxu0
    %v1463 = vadd.f32 %v1273, %v1389
    %v1464 = vxor.u32 %v1463, 2147483648
    %v1465 = vmul.f32 %v1464, 1.442695
    %v1466 = vpow.pop %v1465
    %v1467 = vadd.f32 %v1466, 1.0
    %v1468 = vrcp.pop %v1467
    %v1469 = vmul.f32 1.0, %v1468
    %v1471 = vrot.slane %v1273, 2
    %v1473 = vadd.f32 %v1471, %v1391
    %v1474 = vxor.u32 %v1473, 2147483648
    %v1475 = vmul.f32 %v1474, 1.442695
    %v1476 = vpow.pop %v1475
    %v1477 = vadd.f32 %v1476, 1.0
    %v1478 = vrcp.pop %v1477
    %v1479 = vmul.f32 1.0, %v1478
    %v1480 = vadd.f32 %v1460, %v392
    %v1481 = vmul.f32 %v1469, %v1480
    %v1482 = vrot.slane %v1273, 4
    %v1484 = vadd.f32 %v1482, %v1481
    %v1485 = vtanh.pop %v1484
    %v1486 = vsub.f32 1.0, %v1479
    %v1487 = vmul.f32 %v1486, %v1485
    %v1488 = vmul.f32 %v1479, %v1269
    %v1489 = vadd.f32 %v1487, %v1488
    %s1490 = scalar_lea.vmem [#allocation9], 8
    %1491 = vst [vmem:[%s1490] sm:$0x3] %v1489
    %s1492 = scalar_lea.vmem [#allocation2], 30
    %v1493 = vld [vmem:[%s1492] sm:$0x3f]
    %v1494 = vld [vmem:[#allocation8] sm:$0xff]
    %v1495 = vld [vmem:[#allocation8 + $0x8] sm:$0xff]
    %v1496 = vld [vmem:[#allocation8 + $0x10] sm:$0xff]
    %v1497 = vld [vmem:[#allocation8 + $0x18] sm:$0xff]
    %v1498 = vld [vmem:[#allocation8 + $0x20] sm:$0xff]
    %v1499 = vld [vmem:[#allocation8 + $0x28] sm:$0xff]
    %v1500 = vld [vmem:[#allocation8 + $0x30] sm:$0xff]
    %v1501 = vld [vmem:[#allocation8 + $0x38] sm:$0xff]
    %v1502 = vld [vmem:[#allocation8 + $0x40] sm:$0xff]
    %v1503 = vld [vmem:[#allocation8 + $0x48] sm:$0xff]
    %v1504 = vld [vmem:[#allocation8 + $0x50] sm:$0xff]
    %v1505 = vld [vmem:[#allocation8 + $0x58] sm:$0xff]
    %v1506 = vld [vmem:[#allocation8 + $0x60] sm:$0xff]
    %v1507 = vld [vmem:[#allocation8 + $0x68] sm:$0xff]
    %v1508 = vld [vmem:[#allocation8 + $0x70] sm:$0xff]
    %v1509 = vld [vmem:[#allocation8 + $0x78] sm:$0xff]
    %v1510 = vld [vmem:[#allocation8 + $0x80] sm:$0xff]
    %v1511 = vld [vmem:[#allocation8 + $0x88] sm:$0xff]
    %v1512 = vld [vmem:[#allocation8 + $0x90] sm:$0xff]
    %v1513 = vld [vmem:[#allocation8 + $0x98] sm:$0xff]
    %v1514 = vld [vmem:[#allocation8 + $0xa0] sm:$0xff]
    %v1515 = vld [vmem:[#allocation8 + $0xa8] sm:$0xff]
    %v1516 = vld [vmem:[#allocation8 + $0xb0] sm:$0xff]
    %v1517 = vld [vmem:[#allocation8 + $0xb8] sm:$0xff]
    %v1518 = vld [vmem:[#allocation8 + $0xc0] sm:$0xff]
    %v1519 = vld [vmem:[#allocation8 + $0xc8] sm:$0xff]
    %v1520 = vld [vmem:[#allocation8 + $0xd0] sm:$0xff]
    %v1521 = vld [vmem:[#allocation8 + $0xd8] sm:$0xff]
    %v1522 = vld [vmem:[#allocation8 + $0xe0] sm:$0xff]
    %v1523 = vld [vmem:[#allocation8 + $0xe8] sm:$0xff]
    %v1524 = vld [vmem:[#allocation8 + $0xf0] sm:$0xff]
    %v1525 = vld [vmem:[#allocation8 + $0xf8] sm:$0xff]
    %v1526 = vld [vmem:[#allocation8 + $0x100] sm:$0xff]
    %v1527 = vld [vmem:[#allocation8 + $0x108] sm:$0xff]
    %v1528 = vld [vmem:[#allocation8 + $0x110] sm:$0xff]
    %v1529 = vld [vmem:[#allocation8 + $0x118] sm:$0xff]
    %v1530 = vld [vmem:[#allocation8 + $0x120] sm:$0xff]
    %v1531 = vld [vmem:[#allocation8 + $0x128] sm:$0xff]
    %v1532 = vld [vmem:[#allocation8 + $0x130] sm:$0xff]
    %v1533 = vld [vmem:[#allocation8 + $0x138] sm:$0xff]
    %v1534 = vld [vmem:[#allocation8 + $0x140] sm:$0xff]
    %v1535 = vld [vmem:[#allocation8 + $0x148] sm:$0xff]
    %v1536 = vld [vmem:[#allocation8 + $0x150] sm:$0xff]
    %v1537 = vld [vmem:[#allocation8 + $0x158] sm:$0xff]
    %v1538 = vld [vmem:[#allocation8 + $0x160] sm:$0xff]
    %v1539 = vld [vmem:[#allocation8 + $0x168] sm:$0xff]
    %v1540 = vld [vmem:[#allocation8 + $0x170] sm:$0xff]
    %v1541 = vld [vmem:[#allocation8 + $0x178] sm:$0xff]
    %1542 = vmatprep.subr.mxu0 %v1495
    %1543 = vmatpush1.msra.mxu0 %v1494
    %1544 = vmatprep.subr.mxu0 %v1498
    %1545 = vmatpush1.msra.mxu0 %v1497
    %1546 = vmatprep.subr.mxu0 %v1501
    %1547 = vmatpush1.msra.mxu0 %v1500
    %1548 = vmatprep.subr.mxu0 %v1504
    %1549 = vmatpush1.msra.mxu0 %v1503
    %1550 = vmatprep.subr.mxu0 %v1507
    %1551 = vmatpush1.msra.mxu0 %v1506
    %1552 = vmatprep.subr.mxu0 %v1510
    %1553 = vmatpush1.msra.mxu0 %v1509
    %1554 = vmatprep.subr.mxu0 %v1513
    %1555 = vmatpush1.msra.mxu0 %v1512
    %1556 = vmatprep.subr.mxu0 %v1516
    %1557 = vmatpush1.msra.mxu0 %v1515
    %1558 = vmatprep.subr.mxu0 %v1519
    %1559 = vmatpush1.msra.mxu0 %v1518
    %1560 = vmatprep.subr.mxu0 %v1522
    %1561 = vmatpush1.msra.mxu0 %v1521
    %1562 = vmatprep.subr.mxu0 %v1525
    %1563 = vmatpush1.msra.mxu0 %v1524
    %1564 = vmatprep.subr.mxu0 %v1528
    %1565 = vmatpush1.msra.mxu0 %v1527
    %1566 = vmatprep.subr.mxu0 %v1531
    %1567 = vmatpush1.msra.mxu0 %v1530
    %1568 = vmatprep.subr.mxu0 %v1534
    %1569 = vmatpush1.msra.mxu0 %v1533
    %1570 = vmatprep.subr.mxu0 %v1537
    %1571 = vmatpush1.msra.mxu0 %v1536
    %1572 = vmatprep.subr.mxu0 %v1540
    %1573 = vmatpush1.msra.mxu0 %v1539
    %1574 = vmatprep.subr.mxu0 0.0
    %1575 = vmatpush1.msra.mxu0 0.0
    %1576 = vmatprep.subr.mxu0 0.0
    %1577 = vmatpush1.msra.mxu0 0.0
    %1578 = vmatprep.subr.mxu0 0.0
    %1579 = vmatpush1.msra.mxu0 0.0
    %1580 = vmatprep.subr.mxu0 0.0
    %1581 = vmatpush1.msra.mxu0 0.0
    %1582 = vmatprep.subr.mxu0 0.0
    %1583 = vmatpush1.msra.mxu0 0.0
    %1584 = vmatprep.subr.mxu0 0.0
    %1585 = vmatpush1.msra.mxu0 0.0
    %1586 = vmatprep.subr.mxu0 0.0
    %1587 = vmatpush1.msra.mxu0 0.0
    %1588 = vmatprep.subr.mxu0 0.0
    %1589 = vmatpush1.msra.mxu0 0.0
    %1590 = vmatprep.subr.mxu0 0.0
    %1591 = vmatpush1.msra.mxu0 0.0
    %1592 = vmatprep.subr.mxu0 0.0
    %1593 = vmatpush1.msra.mxu0 0.0
    %1594 = vmatprep.subr.mxu0 0.0
    %1595 = vmatpush1.msra.mxu0 0.0
    %1596 = vmatprep.subr.mxu0 0.0
    %1597 = vmatpush1.msra.mxu0 0.0
    %1598 = vmatprep.subr.mxu0 0.0
    %1599 = vmatpush1.msra.mxu0 0.0
    %1600 = vmatprep.subr.mxu0 0.0
    %1601 = vmatpush1.msra.mxu0 0.0
    %1602 = vmatprep.subr.mxu0 0.0
    %1603 = vmatpush1.msra.mxu0 0.0
    %1604 = vmatprep.subr.mxu0 0.0
    %1605 = vmatpush1.msra.mxu0 0.0
    %1606 = vmatprep.mubr.f32.mxu0 0.0
    %1607 = vmatmul.mubr.f32.gmra.mrb[0].mxu0 %v1489
    %v1608 = vpop.f32.mrb[0].mxu0
    %v1609 = vadd.f32 0.0, %v1608
    %v1610 = vpop.f32.mrb[0].mxu0
    %v1611 = vadd.f32 0.0, %v1610
    %1612 = vdwg.mxu0
    %1613 = vmatprep.subr.mxu0 0.0
    %1614 = vmatpush1.msra.mxu0 %v1496
    %1615 = vmatprep.subr.mxu0 0.0
    %1616 = vmatpush1.msra.mxu0 %v1499
    %1617 = vmatprep.subr.mxu0 0.0
    %1618 = vmatpush1.msra.mxu0 %v1502
    %1619 = vmatprep.subr.mxu0 0.0
    %1620 = vmatpush1.msra.mxu0 %v1505
    %1621 = vmatprep.subr.mxu0 0.0
    %1622 = vmatpush1.msra.mxu0 %v1508
    %1623 = vmatprep.subr.mxu0 0.0
    %1624 = vmatpush1.msra.mxu0 %v1511
    %1625 = vmatprep.subr.mxu0 0.0
    %1626 = vmatpush1.msra.mxu0 %v1514
    %1627 = vmatprep.subr.mxu0 0.0
    %1628 = vmatpush1.msra.mxu0 %v1517
    %1629 = vmatprep.subr.mxu0 0.0
    %1630 = vmatpush1.msra.mxu0 %v1520
    %1631 = vmatprep.subr.mxu0 0.0
    %1632 = vmatpush1.msra.mxu0 %v1523
    %1633 = vmatprep.subr.mxu0 0.0
    %1634 = vmatpush1.msra.mxu0 %v1526
    %1635 = vmatprep.subr.mxu0 0.0
    %1636 = vmatpush1.msra.mxu0 %v1529
    %1637 = vmatprep.subr.mxu0 0.0
    %1638 = vmatpush1.msra.mxu0 %v1532
    %1639 = vmatprep.subr.mxu0 0.0
    %1640 = vmatpush1.msra.mxu0 %v1535
    %1641 = vmatprep.subr.mxu0 0.0
    %1642 = vmatpush1.msra.mxu0 %v1538
    %1643 = vmatprep.subr.mxu0 0.0
    %1644 = vmatpush1.msra.mxu0 %v1541
    %1645 = vmatprep.subr.mxu0 0.0
    %1646 = vmatpush1.msra.mxu0 0.0
    %1647 = vmatprep.subr.mxu0 0.0
    %1648 = vmatpush1.msra.mxu0 0.0
    %1649 = vmatprep.subr.mxu0 0.0
    %1650 = vmatpush1.msra.mxu0 0.0
    %1651 = vmatprep.subr.mxu0 0.0
    %1652 = vmatpush1.msra.mxu0 0.0
    %1653 = vmatprep.subr.mxu0 0.0
    %1654 = vmatpush1.msra.mxu0 0.0
    %1655 = vmatprep.subr.mxu0 0.0
    %1656 = vmatpush1.msra.mxu0 0.0
    %1657 = vmatprep.subr.mxu0 0.0
    %1658 = vmatpush1.msra.mxu0 0.0
    %1659 = vmatprep.subr.mxu0 0.0
    %1660 = vmatpush1.msra.mxu0 0.0
    %1661 = vmatprep.subr.mxu0 0.0
    %1662 = vmatpush1.msra.mxu0 0.0
    %1663 = vmatprep.subr.mxu0 0.0
    %1664 = vmatpush1.msra.mxu0 0.0
    %1665 = vmatprep.subr.mxu0 0.0
    %1666 = vmatpush1.msra.mxu0 0.0
    %1667 = vmatprep.subr.mxu0 0.0
    %1668 = vmatpush1.msra.mxu0 0.0
    %1669 = vmatprep.subr.mxu0 0.0
    %1670 = vmatpush1.msra.mxu0 0.0
    %1671 = vmatprep.subr.mxu0 0.0
    %1672 = vmatpush1.msra.mxu0 0.0
    %1673 = vmatprep.subr.mxu0 0.0
    %1674 = vmatpush1.msra.mxu0 0.0
    %1675 = vmatprep.subr.mxu0 0.0
    %1676 = vmatpush1.msra.mxu0 0.0
    %1677 = vmatprep.mubr.f32.mxu0 0.0
    %1678 = vmatmul.mubr.f32.gmra.mrb[0].mxu0 %v1489
    %v1679 = vpop.f32.mrb[0].mxu0
    %v1680 = vadd.f32 0.0, %v1679
    %v1681 = vpop.f32.mrb[0].mxu0
    %1682 = vdwg.mxu0
    %v1683 = vadd.f32 %v1493, %v1609
    %v1684 = vxor.u32 %v1683, 2147483648
    %v1685 = vmul.f32 %v1684, 1.442695
    %v1686 = vpow.pop %v1685
    %v1687 = vadd.f32 %v1686, 1.0
    %v1688 = vrcp.pop %v1687
    %v1689 = vmul.f32 1.0, %v1688
    %v1691 = vrot.slane %v1493, 2
    %v1693 = vadd.f32 %v1691, %v1611
    %v1694 = vxor.u32 %v1693, 2147483648
    %v1695 = vmul.f32 %v1694, 1.442695
    %v1696 = vpow.pop %v1695
    %v1697 = vadd.f32 %v1696, 1.0
    %v1698 = vrcp.pop %v1697
    %v1699 = vmul.f32 1.0, %v1698
    %v1700 = vadd.f32 %v1680, %v392
    %v1701 = vmul.f32 %v1689, %v1700
    %v1702 = vrot.slane %v1493, 4
    %v1704 = vadd.f32 %v1702, %v1701
    %v1705 = vtanh.pop %v1704
    %v1706 = vsub.f32 1.0, %v1699
    %v1707 = vmul.f32 %v1706, %v1705
    %v1708 = vmul.f32 %v1699, %v1489
    %v1709 = vadd.f32 %v1707, %v1708
    %s1710 = scalar_lea.vmem [#allocation9], 10
    %1711 = vst [vmem:[%s1710] sm:$0x3] %v1709
    %s1712 = scalar_lea.vmem [#allocation2], 36
    %v1713 = vld [vmem:[%s1712] sm:$0x3f]
    %v1714 = vld [vmem:[#allocation8] sm:$0xff]
    %v1715 = vld [vmem:[#allocation8 + $0x8] sm:$0xff]
    %v1716 = vld [vmem:[#allocation8 + $0x10] sm:$0xff]
    %v1717 = vld [vmem:[#allocation8 + $0x18] sm:$0xff]
    %v1718 = vld [vmem:[#allocation8 + $0x20] sm:$0xff]
    %v1719 = vld [vmem:[#allocation8 + $0x28] sm:$0xff]
    %v1720 = vld [vmem:[#allocation8 + $0x30] sm:$0xff]
    %v1721 = vld [vmem:[#allocation8 + $0x38] sm:$0xff]
    %v1722 = vld [vmem:[#allocation8 + $0x40] sm:$0xff]
    %v1723 = vld [vmem:[#allocation8 + $0x48] sm:$0xff]
    %v1724 = vld [vmem:[#allocation8 + $0x50] sm:$0xff]
    %v1725 = vld [vmem:[#allocation8 + $0x58] sm:$0xff]
    %v1726 = vld [vmem:[#allocation8 + $0x60] sm:$0xff]
    %v1727 = vld [vmem:[#allocation8 + $0x68] sm:$0xff]
    %v1728 = vld [vmem:[#allocation8 + $0x70] sm:$0xff]
    %v1729 = vld [vmem:[#allocation8 + $0x78] sm:$0xff]
    %v1730 = vld [vmem:[#allocation8 + $0x80] sm:$0xff]
    %v1731 = vld [vmem:[#allocation8 + $0x88] sm:$0xff]
    %v1732 = vld [vmem:[#allocation8 + $0x90] sm:$0xff]
    %v1733 = vld [vmem:[#allocation8 + $0x98] sm:$0xff]
    %v1734 = vld [vmem:[#allocation8 + $0xa0] sm:$0xff]
    %v1735 = vld [vmem:[#allocation8 + $0xa8] sm:$0xff]
    %v1736 = vld [vmem:[#allocation8 + $0xb0] sm:$0xff]
    %v1737 = vld [vmem:[#allocation8 + $0xb8] sm:$0xff]
    %v1738 = vld [vmem:[#allocation8 + $0xc0] sm:$0xff]
    %v1739 = vld [vmem:[#allocation8 + $0xc8] sm:$0xff]
    %v1740 = vld [vmem:[#allocation8 + $0xd0] sm:$0xff]
    %v1741 = vld [vmem:[#allocation8 + $0xd8] sm:$0xff]
    %v1742 = vld [vmem:[#allocation8 + $0xe0] sm:$0xff]
    %v1743 = vld [vmem:[#allocation8 + $0xe8] sm:$0xff]
    %v1744 = vld [vmem:[#allocation8 + $0xf0] sm:$0xff]
    %v1745 = vld [vmem:[#allocation8 + $0xf8] sm:$0xff]
    %v1746 = vld [vmem:[#allocation8 + $0x100] sm:$0xff]
    %v1747 = vld [vmem:[#allocation8 + $0x108] sm:$0xff]
    %v1748 = vld [vmem:[#allocation8 + $0x110] sm:$0xff]
    %v1749 = vld [vmem:[#allocation8 + $0x118] sm:$0xff]
    %v1750 = vld [vmem:[#allocation8 + $0x120] sm:$0xff]
    %v1751 = vld [vmem:[#allocation8 + $0x128] sm:$0xff]
    %v1752 = vld [vmem:[#allocation8 + $0x130] sm:$0xff]
    %v1753 = vld [vmem:[#allocation8 + $0x138] sm:$0xff]
    %v1754 = vld [vmem:[#allocation8 + $0x140] sm:$0xff]
    %v1755 = vld [vmem:[#allocation8 + $0x148] sm:$0xff]
    %v1756 = vld [vmem:[#allocation8 + $0x150] sm:$0xff]
    %v1757 = vld [vmem:[#allocation8 + $0x158] sm:$0xff]
    %v1758 = vld [vmem:[#allocation8 + $0x160] sm:$0xff]
    %v1759 = vld [vmem:[#allocation8 + $0x168] sm:$0xff]
    %v1760 = vld [vmem:[#allocation8 + $0x170] sm:$0xff]
    %v1761 = vld [vmem:[#allocation8 + $0x178] sm:$0xff]
    %1762 = vmatprep.subr.mxu0 %v1715
    %1763 = vmatpush1.msra.mxu0 %v1714
    %1764 = vmatprep.subr.mxu0 %v1718
    %1765 = vmatpush1.msra.mxu0 %v1717
    %1766 = vmatprep.subr.mxu0 %v1721
    %1767 = vmatpush1.msra.mxu0 %v1720
    %1768 = vmatprep.subr.mxu0 %v1724
    %1769 = vmatpush1.msra.mxu0 %v1723
    %1770 = vmatprep.subr.mxu0 %v1727
    %1771 = vmatpush1.msra.mxu0 %v1726
    %1772 = vmatprep.subr.mxu0 %v1730
    %1773 = vmatpush1.msra.mxu0 %v1729
    %1774 = vmatprep.subr.mxu0 %v1733
    %1775 = vmatpush1.msra.mxu0 %v1732
    %1776 = vmatprep.subr.mxu0 %v1736
    %1777 = vmatpush1.msra.mxu0 %v1735
    %1778 = vmatprep.subr.mxu0 %v1739
    %1779 = vmatpush1.msra.mxu0 %v1738
    %1780 = vmatprep.subr.mxu0 %v1742
    %1781 = vmatpush1.msra.mxu0 %v1741
    %1782 = vmatprep.subr.mxu0 %v1745
    %1783 = vmatpush1.msra.mxu0 %v1744
    %1784 = vmatprep.subr.mxu0 %v1748
    %1785 = vmatpush1.msra.mxu0 %v1747
    %1786 = vmatprep.subr.mxu0 %v1751
    %1787 = vmatpush1.msra.mxu0 %v1750
    %1788 = vmatprep.subr.mxu0 %v1754
    %1789 = vmatpush1.msra.mxu0 %v1753
    %1790 = vmatprep.subr.mxu0 %v1757
    %1791 = vmatpush1.msra.mxu0 %v1756
    %1792 = vmatprep.subr.mxu0 %v1760
    %1793 = vmatpush1.msra.mxu0 %v1759
    %1794 = vmatprep.subr.mxu0 0.0
    %1795 = vmatpush1.msra.mxu0 0.0
    %1796 = vmatprep.subr.mxu0 0.0
    %1797 = vmatpush1.msra.mxu0 0.0
    %1798 = vmatprep.subr.mxu0 0.0
    %1799 = vmatpush1.msra.mxu0 0.0
    %1800 = vmatprep.subr.mxu0 0.0
    %1801 = vmatpush1.msra.mxu0 0.0
    %1802 = vmatprep.subr.mxu0 0.0
    %1803 = vmatpush1.msra.mxu0 0.0
    %1804 = vmatprep.subr.mxu0 0.0
    %1805 = vmatpush1.msra.mxu0 0.0
    %1806 = vmatprep.subr.mxu0 0.0
    %1807 = vmatpush1.msra.mxu0 0.0
    %1808 = vmatprep.subr.mxu0 0.0
    %1809 = vmatpush1.msra.mxu0 0.0
    %1810 = vmatprep.subr.mxu0 0.0
    %1811 = vmatpush1.msra.mxu0 0.0
    %1812 = vmatprep.subr.mxu0 0.0
    %1813 = vmatpush1.msra.mxu0 0.0
    %1814 = vmatprep.subr.mxu0 0.0
    %1815 = vmatpush1.msra.mxu0 0.0
    %1816 = vmatprep.subr.mxu0 0.0
    %1817 = vmatpush1.msra.mxu0 0.0
    %1818 = vmatprep.subr.mxu0 0.0
    %1819 = vmatpush1.msra.mxu0 0.0
    %1820 = vmatprep.subr.mxu0 0.0
    %1821 = vmatpush1.msra.mxu0 0.0
    %1822 = vmatprep.subr.mxu0 0.0
    %1823 = vmatpush1.msra.mxu0 0.0
    %1824 = vmatprep.subr.mxu0 0.0
    %1825 = vmatpush1.msra.mxu0 0.0
    %1826 = vmatprep.mubr.f32.mxu0 0.0
    %1827 = vmatmul.mubr.f32.gmra.mrb[0].mxu0 %v1709
    %v1828 = vpop.f32.mrb[0].mxu0
    %v1829 = vadd.f32 0.0, %v1828
    %v1830 = vpop.f32.mrb[0].mxu0
    %v1831 = vadd.f32 0.0, %v1830
    %1832 = vdwg.mxu0
    %1833 = vmatprep.subr.mxu0 0.0
    %1834 = vmatpush1.msra.mxu0 %v1716
    %1835 = vmatprep.subr.mxu0 0.0
    %1836 = vmatpush1.msra.mxu0 %v1719
    %1837 = vmatprep.subr.mxu0 0.0
    %1838 = vmatpush1.msra.mxu0 %v1722
    %1839 = vmatprep.subr.mxu0 0.0
    %1840 = vmatpush1.msra.mxu0 %v1725
    %1841 = vmatprep.subr.mxu0 0.0
    %1842 = vmatpush1.msra.mxu0 %v1728
    %1843 = vmatprep.subr.mxu0 0.0
    %1844 = vmatpush1.msra.mxu0 %v1731
    %1845 = vmatprep.subr.mxu0 0.0
    %1846 = vmatpush1.msra.mxu0 %v1734
    %1847 = vmatprep.subr.mxu0 0.0
    %1848 = vmatpush1.msra.mxu0 %v1737
    %1849 = vmatprep.subr.mxu0 0.0
    %1850 = vmatpush1.msra.mxu0 %v1740
    %1851 = vmatprep.subr.mxu0 0.0
    %1852 = vmatpush1.msra.mxu0 %v1743
    %1853 = vmatprep.subr.mxu0 0.0
    %1854 = vmatpush1.msra.mxu0 %v1746
    %1855 = vmatprep.subr.mxu0 0.0
    %1856 = vmatpush1.msra.mxu0 %v1749
    %1857 = vmatprep.subr.mxu0 0.0
    %1858 = vmatpush1.msra.mxu0 %v1752
    %1859 = vmatprep.subr.mxu0 0.0
    %1860 = vmatpush1.msra.mxu0 %v1755
    %1861 = vmatprep.subr.mxu0 0.0
    %1862 = vmatpush1.msra.mxu0 %v1758
    %1863 = vmatprep.subr.mxu0 0.0
    %1864 = vmatpush1.msra.mxu0 %v1761
    %1865 = vmatprep.subr.mxu0 0.0
    %1866 = vmatpush1.msra.mxu0 0.0
    %1867 = vmatprep.subr.mxu0 0.0
    %1868 = vmatpush1.msra.mxu0 0.0
    %1869 = vmatprep.subr.mxu0 0.0
    %1870 = vmatpush1.msra.mxu0 0.0
    %1871 = vmatprep.subr.mxu0 0.0
    %1872 = vmatpush1.msra.mxu0 0.0
    %1873 = vmatprep.subr.mxu0 0.0
    %1874 = vmatpush1.msra.mxu0 0.0
    %1875 = vmatprep.subr.mxu0 0.0
    %1876 = vmatpush1.msra.mxu0 0.0
    %1877 = vmatprep.subr.mxu0 0.0
    %1878 = vmatpush1.msra.mxu0 0.0
    %1879 = vmatprep.subr.mxu0 0.0
    %1880 = vmatpush1.msra.mxu0 0.0
    %1881 = vmatprep.subr.mxu0 0.0
    %1882 = vmatpush1.msra.mxu0 0.0
    %1883 = vmatprep.subr.mxu0 0.0
    %1884 = vmatpush1.msra.mxu0 0.0
    %1885 = vmatprep.subr.mxu0 0.0
    %1886 = vmatpush1.msra.mxu0 0.0
    %1887 = vmatprep.subr.mxu0 0.0
    %1888 = vmatpush1.msra.mxu0 0.0
    %1889 = vmatprep.subr.mxu0 0.0
    %1890 = vmatpush1.msra.mxu0 0.0
    %1891 = vmatprep.subr.mxu0 0.0
    %1892 = vmatpush1.msra.mxu0 0.0
    %1893 = vmatprep.subr.mxu0 0.0
    %1894 = vmatpush1.msra.mxu0 0.0
    %1895 = vmatprep.subr.mxu0 0.0
    %1896 = vmatpush1.msra.mxu0 0.0
    %1897 = vmatprep.mubr.f32.mxu0 0.0
    %1898 = vmatmul.mubr.f32.gmra.mrb[0].mxu0 %v1709
    %v1899 = vpop.f32.mrb[0].mxu0
    %v1900 = vadd.f32 0.0, %v1899
    %v1901 = vpop.f32.mrb[0].mxu0
    %1902 = vdwg.mxu0
    %v1903 = vadd.f32 %v1713, %v1829
    %v1904 = vxor.u32 %v1903, 2147483648
    %v1905 = vmul.f32 %v1904, 1.442695
    %v1906 = vpow.pop %v1905
    %v1907 = vadd.f32 %v1906, 1.0
    %v1908 = vrcp.pop %v1907
    %v1909 = vmul.f32 1.0, %v1908
    %v1911 = vrot.slane %v1713, 2
    %v1913 = vadd.f32 %v1911, %v1831
    %v1914 = vxor.u32 %v1913, 2147483648
    %v1915 = vmul.f32 %v1914, 1.442695
    %v1916 = vpow.pop %v1915
    %v1917 = vadd.f32 %v1916, 1.0
    %v1918 = vrcp.pop %v1917
    %v1919 = vmul.f32 1.0, %v1918
    %v1920 = vadd.f32 %v1900, %v392
    %v1921 = vmul.f32 %v1909, %v1920
    %v1922 = vrot.slane %v1713, 4
    %v1924 = vadd.f32 %v1922, %v1921
    %v1925 = vtanh.pop %v1924
    %v1926 = vsub.f32 1.0, %v1919
    %v1927 = vmul.f32 %v1926, %v1925
    %v1928 = vmul.f32 %v1919, %v1709
    %v1929 = vadd.f32 %v1927, %v1928
    %s1930 = scalar_lea.vmem [#allocation9], 12
    %1931 = vst [vmem:[%s1930] sm:$0x3] %v1929
    %s1932 = scalar_lea.vmem [#allocation2], 42
    %v1933 = vld [vmem:[%s1932] sm:$0x3f]
    %v1934 = vld [vmem:[#allocation8] sm:$0xff]
    %v1935 = vld [vmem:[#allocation8 + $0x8] sm:$0xff]
    %v1936 = vld [vmem:[#allocation8 + $0x10] sm:$0xff]
    %v1937 = vld [vmem:[#allocation8 + $0x18] sm:$0xff]
    %v1938 = vld [vmem:[#allocation8 + $0x20] sm:$0xff]
    %v1939 = vld [vmem:[#allocation8 + $0x28] sm:$0xff]
    %v1940 = vld [vmem:[#allocation8 + $0x30] sm:$0xff]
    %v1941 = vld [vmem:[#allocation8 + $0x38] sm:$0xff]
    %v1942 = vld [vmem:[#allocation8 + $0x40] sm:$0xff]
    %v1943 = vld [vmem:[#allocation8 + $0x48] sm:$0xff]
    %v1944 = vld [vmem:[#allocation8 + $0x50] sm:$0xff]
    %v1945 = vld [vmem:[#allocation8 + $0x58] sm:$0xff]
    %v1946 = vld [vmem:[#allocation8 + $0x60] sm:$0xff]
    %v1947 = vld [vmem:[#allocation8 + $0x68] sm:$0xff]
    %v1948 = vld [vmem:[#allocation8 + $0x70] sm:$0xff]
    %v1949 = vld [vmem:[#allocation8 + $0x78] sm:$0xff]
    %v1950 = vld [vmem:[#allocation8 + $0x80] sm:$0xff]
    %v1951 = vld [vmem:[#allocation8 + $0x88] sm:$0xff]
    %v1952 = vld [vmem:[#allocation8 + $0x90] sm:$0xff]
    %v1953 = vld [vmem:[#allocation8 + $0x98] sm:$0xff]
    %v1954 = vld [vmem:[#allocation8 + $0xa0] sm:$0xff]
    %v1955 = vld [vmem:[#allocation8 + $0xa8] sm:$0xff]
    %v1956 = vld [vmem:[#allocation8 + $0xb0] sm:$0xff]
    %v1957 = vld [vmem:[#allocation8 + $0xb8] sm:$0xff]
    %v1958 = vld [vmem:[#allocation8 + $0xc0] sm:$0xff]
    %v1959 = vld [vmem:[#allocation8 + $0xc8] sm:$0xff]
    %v1960 = vld [vmem:[#allocation8 + $0xd0] sm:$0xff]
    %v1961 = vld [vmem:[#allocation8 + $0xd8] sm:$0xff]
    %v1962 = vld [vmem:[#allocation8 + $0xe0] sm:$0xff]
    %v1963 = vld [vmem:[#allocation8 + $0xe8] sm:$0xff]
    %v1964 = vld [vmem:[#allocation8 + $0xf0] sm:$0xff]
    %v1965 = vld [vmem:[#allocation8 + $0xf8] sm:$0xff]
    %v1966 = vld [vmem:[#allocation8 + $0x100] sm:$0xff]
    %v1967 = vld [vmem:[#allocation8 + $0x108] sm:$0xff]
    %v1968 = vld [vmem:[#allocation8 + $0x110] sm:$0xff]
    %v1969 = vld [vmem:[#allocation8 + $0x118] sm:$0xff]
    %v1970 = vld [vmem:[#allocation8 + $0x120] sm:$0xff]
    %v1971 = vld [vmem:[#allocation8 + $0x128] sm:$0xff]
    %v1972 = vld [vmem:[#allocation8 + $0x130] sm:$0xff]
    %v1973 = vld [vmem:[#allocation8 + $0x138] sm:$0xff]
    %v1974 = vld [vmem:[#allocation8 + $0x140] sm:$0xff]
    %v1975 = vld [vmem:[#allocation8 + $0x148] sm:$0xff]
    %v1976 = vld [vmem:[#allocation8 + $0x150] sm:$0xff]
    %v1977 = vld [vmem:[#allocation8 + $0x158] sm:$0xff]
    %v1978 = vld [vmem:[#allocation8 + $0x160] sm:$0xff]
    %v1979 = vld [vmem:[#allocation8 + $0x168] sm:$0xff]
    %v1980 = vld [vmem:[#allocation8 + $0x170] sm:$0xff]
    %v1981 = vld [vmem:[#allocation8 + $0x178] sm:$0xff]
    %1982 = vmatprep.subr.mxu0 %v1935
    %1983 = vmatpush1.msra.mxu0 %v1934
    %1984 = vmatprep.subr.mxu0 %v1938
    %1985 = vmatpush1.msra.mxu0 %v1937
    %1986 = vmatprep.subr.mxu0 %v1941
    %1987 = vmatpush1.msra.mxu0 %v1940
    %1988 = vmatprep.subr.mxu0 %v1944
    %1989 = vmatpush1.msra.mxu0 %v1943
    %1990 = vmatprep.subr.mxu0 %v1947
    %1991 = vmatpush1.msra.mxu0 %v1946
    %1992 = vmatprep.subr.mxu0 %v1950
    %1993 = vmatpush1.msra.mxu0 %v1949
    %1994 = vmatprep.subr.mxu0 %v1953
    %1995 = vmatpush1.msra.mxu0 %v1952
    %1996 = vmatprep.subr.mxu0 %v1956
    %1997 = vmatpush1.msra.mxu0 %v1955
    %1998 = vmatprep.subr.mxu0 %v1959
    %1999 = vmatpush1.msra.mxu0 %v1958
    %2000 = vmatprep.subr.mxu0 %v1962
    %2001 = vmatpush1.msra.mxu0 %v1961
    %2002 = vmatprep.subr.mxu0 %v1965
    %2003 = vmatpush1.msra.mxu0 %v1964
    %2004 = vmatprep.subr.mxu0 %v1968
    %2005 = vmatpush1.msra.mxu0 %v1967
    %2006 = vmatprep.subr.mxu0 %v1971
    %2007 = vmatpush1.msra.mxu0 %v1970
    %2008 = vmatprep.subr.mxu0 %v1974
    %2009 = vmatpush1.msra.mxu0 %v1973
    %2010 = vmatprep.subr.mxu0 %v1977
    %2011 = vmatpush1.msra.mxu0 %v1976
    %2012 = vmatprep.subr.mxu0 %v1980
    %2013 = vmatpush1.msra.mxu0 %v1979
    %2014 = vmatprep.subr.mxu0 0.0
    %2015 = vmatpush1.msra.mxu0 0.0
    %2016 = vmatprep.subr.mxu0 0.0
    %2017 = vmatpush1.msra.mxu0 0.0
    %2018 = vmatprep.subr.mxu0 0.0
    %2019 = vmatpush1.msra.mxu0 0.0
    %2020 = vmatprep.subr.mxu0 0.0
    %2021 = vmatpush1.msra.mxu0 0.0
    %2022 = vmatprep.subr.mxu0 0.0
    %2023 = vmatpush1.msra.mxu0 0.0
    %2024 = vmatprep.subr.mxu0 0.0
    %2025 = vmatpush1.msra.mxu0 0.0
    %2026 = vmatprep.subr.mxu0 0.0
    %2027 = vmatpush1.msra.mxu0 0.0
    %2028 = vmatprep.subr.mxu0 0.0
    %2029 = vmatpush1.msra.mxu0 0.0
    %2030 = vmatprep.subr.mxu0 0.0
    %2031 = vmatpush1.msra.mxu0 0.0
    %2032 = vmatprep.subr.mxu0 0.0
    %2033 = vmatpush1.msra.mxu0 0.0
    %2034 = vmatprep.subr.mxu0 0.0
    %2035 = vmatpush1.msra.mxu0 0.0
    %2036 = vmatprep.subr.mxu0 0.0
    %2037 = vmatpush1.msra.mxu0 0.0
    %2038 = vmatprep.subr.mxu0 0.0
    %2039 = vmatpush1.msra.mxu0 0.0
    %2040 = vmatprep.subr.mxu0 0.0
    %2041 = vmatpush1.msra.mxu0 0.0
    %2042 = vmatprep.subr.mxu0 0.0
    %2043 = vmatpush1.msra.mxu0 0.0
    %2044 = vmatprep.subr.mxu0 0.0
    %2045 = vmatpush1.msra.mxu0 0.0
    %2046 = vmatprep.mubr.f32.mxu0 0.0
    %2047 = vmatmul.mubr.f32.gmra.mrb[0].mxu0 %v1929
    %v2048 = vpop.f32.mrb[0].mxu0
    %v2049 = vadd.f32 0.0, %v2048
    %v2050 = vpop.f32.mrb[0].mxu0
    %v2051 = vadd.f32 0.0, %v2050
    %2052 = vdwg.mxu0
    %2053 = vmatprep.subr.mxu0 0.0
    %2054 = vmatpush1.msra.mxu0 %v1936
    %2055 = vmatprep.subr.mxu0 0.0
    %2056 = vmatpush1.msra.mxu0 %v1939
    %2057 = vmatprep.subr.mxu0 0.0
    %2058 = vmatpush1.msra.mxu0 %v1942
    %2059 = vmatprep.subr.mxu0 0.0
    %2060 = vmatpush1.msra.mxu0 %v1945
    %2061 = vmatprep.subr.mxu0 0.0
    %2062 = vmatpush1.msra.mxu0 %v1948
    %2063 = vmatprep.subr.mxu0 0.0
    %2064 = vmatpush1.msra.mxu0 %v1951
    %2065 = vmatprep.subr.mxu0 0.0
    %2066 = vmatpush1.msra.mxu0 %v1954
    %2067 = vmatprep.subr.mxu0 0.0
    %2068 = vmatpush1.msra.mxu0 %v1957
    %2069 = vmatprep.subr.mxu0 0.0
    %2070 = vmatpush1.msra.mxu0 %v1960
    %2071 = vmatprep.subr.mxu0 0.0
    %2072 = vmatpush1.msra.mxu0 %v1963
    %2073 = vmatprep.subr.mxu0 0.0
    %2074 = vmatpush1.msra.mxu0 %v1966
    %2075 = vmatprep.subr.mxu0 0.0
    %2076 = vmatpush1.msra.mxu0 %v1969
    %2077 = vmatprep.subr.mxu0 0.0
    %2078 = vmatpush1.msra.mxu0 %v1972
    %2079 = vmatprep.subr.mxu0 0.0
    %2080 = vmatpush1.msra.mxu0 %v1975
    %2081 = vmatprep.subr.mxu0 0.0
    %2082 = vmatpush1.msra.mxu0 %v1978
    %2083 = vmatprep.subr.mxu0 0.0
    %2084 = vmatpush1.msra.mxu0 %v1981
    %2085 = vmatprep.subr.mxu0 0.0
    %2086 = vmatpush1.msra.mxu0 0.0
    %2087 = vmatprep.subr.mxu0 0.0
    %2088 = vmatpush1.msra.mxu0 0.0
    %2089 = vmatprep.subr.mxu0 0.0
    %2090 = vmatpush1.msra.mxu0 0.0
    %2091 = vmatprep.subr.mxu0 0.0
    %2092 = vmatpush1.msra.mxu0 0.0
    %2093 = vmatprep.subr.mxu0 0.0
    %2094 = vmatpush1.msra.mxu0 0.0
    %2095 = vmatprep.subr.mxu0 0.0
    %2096 = vmatpush1.msra.mxu0 0.0
    %2097 = vmatprep.subr.mxu0 0.0
    %2098 = vmatpush1.msra.mxu0 0.0
    %2099 = vmatprep.subr.mxu0 0.0
    %2100 = vmatpush1.msra.mxu0 0.0
    %2101 = vmatprep.subr.mxu0 0.0
    %2102 = vmatpush1.msra.mxu0 0.0
    %2103 = vmatprep.subr.mxu0 0.0
    %2104 = vmatpush1.msra.mxu0 0.0
    %2105 = vmatprep.subr.mxu0 0.0
    %2106 = vmatpush1.msra.mxu0 0.0
    %2107 = vmatprep.subr.mxu0 0.0
    %2108 = vmatpush1.msra.mxu0 0.0
    %2109 = vmatprep.subr.mxu0 0.0
    %2110 = vmatpush1.msra.mxu0 0.0
    %2111 = vmatprep.subr.mxu0 0.0
    %2112 = vmatpush1.msra.mxu0 0.0
    %2113 = vmatprep.subr.mxu0 0.0
    %2114 = vmatpush1.msra.mxu0 0.0
    %2115 = vmatprep.subr.mxu0 0.0
    %2116 = vmatpush1.msra.mxu0 0.0
    %2117 = vmatprep.mubr.f32.mxu0 0.0
    %2118 = vmatmul.mubr.f32.gmra.mrb[0].mxu0 %v1929
    %v2119 = vpop.f32.mrb[0].mxu0
    %v2120 = vadd.f32 0.0, %v2119
    %v2121 = vpop.f32.mrb[0].mxu0
    %2122 = vdwg.mxu0
    %v2123 = vadd.f32 %v1933, %v2049
    %v2124 = vxor.u32 %v2123, 2147483648
    %v2125 = vmul.f32 %v2124, 1.442695
    %v2126 = vpow.pop %v2125
    %v2127 = vadd.f32 %v2126, 1.0
    %v2128 = vrcp.pop %v2127
    %v2129 = vmul.f32 1.0, %v2128
    %v2131 = vrot.slane %v1933, 2
    %v2133 = vadd.f32 %v2131, %v2051
    %v2134 = vxor.u32 %v2133, 2147483648
    %v2135 = vmul.f32 %v2134, 1.442695
    %v2136 = vpow.pop %v2135
    %v2137 = vadd.f32 %v2136, 1.0
    %v2138 = vrcp.pop %v2137
    %v2139 = vmul.f32 1.0, %v2138
    %v2140 = vadd.f32 %v2120, %v392
    %v2141 = vmul.f32 %v2129, %v2140
    %v2142 = vrot.slane %v1933, 4
    %v2144 = vadd.f32 %v2142, %v2141
    %v2145 = vtanh.pop %v2144
    %v2146 = vsub.f32 1.0, %v2139
    %v2147 = vmul.f32 %v2146, %v2145
    %v2148 = vmul.f32 %v2139, %v1929
    %v2149 = vadd.f32 %v2147, %v2148
    %s2150 = scalar_lea.vmem [#allocation9], 14
    %2151 = vst [vmem:[%s2150] sm:$0x3] %v2149
    %2152 = vst [vmem:[#allocation10] sm:$0x3] %v2149
    // Predicated region
    $region34: #{tpu_custom_call.1} parent=1 // pred_check
      _
    $region35: #{tpu_custom_call.1} parent=1 // pred_check_branch
      %2154 = sbr.rel (0) target = $region37
    $region36: #{tpu_custom_call.1} parent=1 // pred_region
      %s2156 = ssub.s32 256, 256
      %2157 = vsyncadd [#allocation5], %s2156
      %s2158 = sshll.u32 [#allocation9], 4
      %s2159 = int_to_ptr.vmem [resolvable:$true] %s2158
      %2164 = dma.vmem_to_hbm [thread:$0]  %s2159, 256, %s5, [#allocation5], 32, 32, 2
    $region37: #{tpu_custom_call.1} parent=1 // pred_fallthru
      _
    // Predicated region
    $region38: #{tpu_custom_call.1} parent=1 // pred_check
      _
    $region39: #{tpu_custom_call.1} parent=1 // pred_check_branch
      %2166 = sbr.rel (0) target = $region41
    $region40: #{tpu_custom_call.1} parent=1 // pred_region
      %s2168 = ssub.s32 32, 32
      %2169 = vsyncadd [#allocation11], %s2168
      %s2171 = sshll.u32 [#allocation10], 4
      %s2172 = int_to_ptr.vmem [resolvable:$true] %s2171
      %2174 = dma.vmem_to_hbm [thread:$0]  %s2172, 32, %s6, [#allocation11]
    $region41: #{tpu_custom_call.1} parent=1 // pred_fallthru
      _
    // Predicated region
    $region42: #{tpu_custom_call.1} parent=1 // pred_check
      _
    $region43: #{tpu_custom_call.1} parent=1 // pred_check_branch
      %2176 = sbr.rel (0) target = $region45
    $region44: #{tpu_custom_call.1} parent=1 // pred_region
      %2177 = dma.done [#allocation5], 256
    $region45: #{tpu_custom_call.1} parent=1 // pred_fallthru
      _
    // Predicated region
    $region46: #{tpu_custom_call.1} parent=1 // pred_check
      _
    $region47: #{tpu_custom_call.1} parent=1 // pred_check_branch
      %2179 = sbr.rel (0) target = $region49
    $region48: #{tpu_custom_call.1} parent=1 // pred_region
      %2180 = dma.done [#allocation11], 32
    $region49: #{tpu_custom_call.1} parent=1 // pred_fallthru
      _
    %2181 = vsyncpa [#allocation4], 1
    %2182 = vsyncpa [#allocation7], 1
    %2183 = vsyncpa [#allocation5], 1
    %2184 = vsyncpa [#allocation11], 1

</llo_original>
